<compile_context>
chip_gen: v5e
topology: v5e:2x2
jax: 0.10.0
libtpu: 0.0.40
codegen_flags: <defaults>
</compile_context>

<pallas_src>
import functools
import math

import jax
import jax.numpy as jnp
from jax.experimental import pallas as pl
from jax.experimental.pallas import tpu as pltpu

NUM_CLASSES = 5
PAD_CLASSES = 128          # lane-dense fc3 / softmax width
H1, H2 = 1024, 512
_NEG = -1e9                # pad-lane bias -> exp() underflows to 0


def _round_up(n, m):
    return ((n + m - 1) // m) * m


def _mlp_kernel(a_ref,                         # SMEM (2,) PReLU slopes
                x_ref,                         # [TB, K]   f32 (cast in-kernel)
                w1_ref, b1_ref,                # [K,1024] bf16, [1,1024] f32 (BN folded)
                w2_ref, b2_ref,                # [1024,512] bf16, [1,512] f32 (BN folded)
                w3_ref, b3_ref,                # [512,128] bf16, [1,128] f32 (padded)
                o_ref):                        # [TB, 128] bf16
    # In-kernel cast: avoids a standalone XLA cast pass over x in HBM.
    x = x_ref[...].astype(jnp.bfloat16)

    # ---- fc1 (+ folded BN1) + PReLU ----
    h1 = jnp.dot(x, w1_ref[...], preferred_element_type=jnp.float32) + b1_ref[...]
    a1 = a_ref[0]
    h1 = jnp.where(h1 > 0, h1, a1 * h1)

    # ---- fc2 (+ folded BN2) + PReLU ----
    h2 = jnp.dot(h1.astype(jnp.bfloat16), w2_ref[...],
                 preferred_element_type=jnp.float32) + b2_ref[...]
    a2 = a_ref[1]
    h2 = jnp.where(h2 > 0, h2, a2 * h2)

    # ---- fc3 (padded to 128 lanes) + softmax over lanes ----
    logits = jnp.dot(h2.astype(jnp.bfloat16), w3_ref[...],
                     preferred_element_type=jnp.float32) + b3_ref[...]
    m = jnp.max(logits, axis=1, keepdims=True)
    e = jnp.exp(logits - m)                    # pad lanes: exp(-1e9 - m) == 0
    inv = pl.reciprocal(jnp.sum(e, axis=1, keepdims=True), approx=False)
    o_ref[...] = (e * inv).astype(o_ref.dtype)


@functools.partial(jax.jit, static_argnames=("tb",))
def baseline_model1_forward(x, kparams, tb=512):
    """x: [B, inputsize] float32.  Returns softmax probabilities [B, 5] float32."""
    a, w1, b1, w2, b2, w3, b3 = kparams
    B, K = x.shape

    # ---- batch tiling ------------------------------------------------------
    # TB multiple of 16 (bf16 out-tile sublane packing).  Pick the number of
    # grid steps first so that (a) per-step overhead is amortized (tile up to
    # `tb` rows), (b) the grid has >= 2 steps when B >= 32 so v7x's two
    # TensorCores both get work, (c) batch padding stays minimal.
    B16 = _round_up(B, 16)
    tb0 = max(16, min(tb, B16))
    steps = -(-B // tb0)
    if steps == 1 and B >= 32:
        steps = 2                              # megacore: give core 1 work
    TB = _round_up(-(-B // steps), 16)
    B_pad = TB * steps

    if B_pad != B:
        # zero rows -> finite logits (pad-lane bias only) -> sliced off below
        x = jnp.pad(x, ((0, B_pad - B), (0, 0)))

    grid = (steps,)
    smem = pl.BlockSpec(memory_space=pltpu.MemorySpace.SMEM)

    out = pl.pallas_call(
        _mlp_kernel,
        out_shape=jax.ShapeDtypeStruct((B_pad, PAD_CLASSES), jnp.bfloat16),
        grid=grid,
        in_specs=[
            smem,                                                  # PReLU slopes
            pl.BlockSpec((TB, K), lambda i: (i, 0)),               # x tile (pipelined, f32)
            pl.BlockSpec((K, H1), lambda i: (0, 0)),               # w1 (VMEM-resident)
            pl.BlockSpec((1, H1), lambda i: (0, 0)),               # b1 (BN folded)
            pl.BlockSpec((H1, H2), lambda i: (0, 0)),              # w2
            pl.BlockSpec((1, H2), lambda i: (0, 0)),               # b2 (BN folded)
            pl.BlockSpec((H2, PAD_CLASSES), lambda i: (0, 0)),     # w3 (lane-padded)
            pl.BlockSpec((1, PAD_CLASSES), lambda i: (0, 0)),      # b3 (lane-padded)
        ],
        out_specs=pl.BlockSpec((TB, PAD_CLASSES), lambda i: (i, 0)),
        compiler_params=pltpu.CompilerParams(
            dimension_semantics=("parallel",)),
    )(a, x, w1, b1, w2, b2, w3, b3)

    return out[:B, :NUM_CLASSES].astype(jnp.float32)


# ----------------------------- parameters ---------------------------------

def make_raw_params(inputsize, key):
    """PyTorch-like parameters (f32), deterministic."""
    ks = jax.random.split(key, 6)

    def linear(kw, kb, fan_in, fan_out):
        bound = 1.0 / math.sqrt(fan_in)
        w = jax.random.uniform(kw, (fan_in, fan_out), jnp.float32, -bound, bound)
        b = jax.random.uniform(kb, (fan_out,), jnp.float32, -bound, bound)
        return w, b

    w1, b1 = linear(ks[0], ks[1], inputsize, H1)
    w2, b2 = linear(ks[2], ks[3], H1, H2)
    w3, b3 = linear(ks[4], ks[5], H2, NUM_CLASSES)

    def bn(n):  # BatchNorm1d defaults
        return dict(gamma=jnp.ones((n,), jnp.float32),
                    beta=jnp.zeros((n,), jnp.float32),
                    mean=jnp.zeros((n,), jnp.float32),
                    var=jnp.ones((n,), jnp.float32))

    return dict(w1=w1, b1=b1, bn1=bn(H1), a1=jnp.float32(0.25),
                w2=w2, b2=b2, bn2=bn(H2), a2=jnp.float32(0.25),
                w3=w3, b3=b3)


def fold_params(p, eps=1e-5):
    """Fold eval-mode BN into weights/bias, cast MXU operands to bf16, pad fc3."""
    def fold(w, b, bn):
        scale = bn["gamma"] / jnp.sqrt(bn["var"] + eps)
        shift = bn["beta"] - bn["mean"] * scale
        wf = (w * scale[None, :]).astype(jnp.bfloat16)
        bf = (b * scale + shift)[None, :].astype(jnp.float32)
        return wf, bf

    w1f, b1f = fold(p["w1"], p["b1"], p["bn1"])
    w2f, b2f = fold(p["w2"], p["b2"], p["bn2"])

    w3p = jnp.zeros((H2, PAD_CLASSES), jnp.float32)
    w3p = w3p.at[:, :NUM_CLASSES].set(p["w3"]).astype(jnp.bfloat16)
    b3p = jnp.full((1, PAD_CLASSES), _NEG, jnp.float32)
    b3p = b3p.at[0, :NUM_CLASSES].set(p["b3"])

    a = jnp.stack([p["a1"], p["a2"]]).astype(jnp.float32)
    return (a, w1f, b1f, w2f, b2f, w3p, b3p)


def reference_forward(x, p, eps=1e-5):
    """Pure-JAX f32 reference matching the PyTorch module in eval mode."""
    def bn_apply(h, bn):
        return (h - bn["mean"]) / jnp.sqrt(bn["var"] + eps) * bn["gamma"] + bn["beta"]

    def prelu(h, a):
        return jnp.where(h > 0, h, a * h)

    h = x @ p["w1"] + p["b1"]
    h = prelu(bn_apply(h, p["bn1"]), p["a1"])
    h = h @ p["w2"] + p["b2"]
    h = prelu(bn_apply(h, p["bn2"]), p["a2"])
    logits = h @ p["w3"] + p["b3"]
    return jax.nn.softmax(logits, axis=1)


if __name__ == "__main__":
    inputsize = 32
    batch = 8

    key = jax.random.PRNGKey(0)
    kx, kp = jax.random.split(key)
    x = jax.random.normal(kx, (batch, inputsize), jnp.float32)

    raw = make_raw_params(inputsize, kp)
    kparams = fold_params(raw)

    out = baseline_model1_forward(x, kparams)
    out = jax.block_until_ready(out)

    assert out.shape == (batch, NUM_CLASSES)
    # softmax rows must sum to ~1 (bf16 output quantization -> loose tolerance)
    assert bool(jnp.allclose(jnp.sum(out, axis=1), 1.0, atol=1e-2))
    # match f32 reference within bf16 matmul / bf16-output tolerance
    ref = reference_forward(x, raw)
    assert bool(jnp.allclose(out, ref, atol=2e-2)), float(jnp.max(jnp.abs(out - ref)))
    print("KERNEL_OK")
</pallas_src>

<mosaic_0001>
module attributes {stable_mosaic.version = 11 : i64} {
  func.func @_mlp_kernel(%arg0: i32, %arg1: memref<2xf32, #tpu.memory_space<smem>>, %arg2: memref<16x32xf32, #tpu.memory_space<vmem>>, %arg3: memref<32x1024xbf16, #tpu.memory_space<vmem>>, %arg4: memref<1x1024xf32, #tpu.memory_space<vmem>>, %arg5: memref<1024x512xbf16, #tpu.memory_space<vmem>>, %arg6: memref<1x512xf32, #tpu.memory_space<vmem>>, %arg7: memref<512x128xbf16, #tpu.memory_space<vmem>>, %arg8: memref<1x128xf32, #tpu.memory_space<vmem>>, %arg9: memref<16x128xbf16, #tpu.memory_space<vmem>>) attributes {dimension_semantics = [#tpu.dimension_semantics<parallel>], iteration_bounds = array<i64: 1>, scalar_prefetch = 0 : i64, scratch_operands = 0 : i64, tpu.core_type = #tpu.core_type<tc>, window_params = [{transform_indices = @transform_0, window_bounds = array<i64: 2>}, {transform_indices = @transform_1, window_bounds = array<i64: 16, 32>}, {pipeline_mode = #tpu.pipeline_mode<synchronous>, transform_indices = @transform_2, window_bounds = array<i64: 32, 1024>}, {pipeline_mode = #tpu.pipeline_mode<synchronous>, transform_indices = @transform_3, window_bounds = array<i64: 1, 1024>}, {pipeline_mode = #tpu.pipeline_mode<synchronous>, transform_indices = @transform_4, window_bounds = array<i64: 1024, 512>}, {pipeline_mode = #tpu.pipeline_mode<synchronous>, transform_indices = @transform_5, window_bounds = array<i64: 1, 512>}, {pipeline_mode = #tpu.pipeline_mode<synchronous>, transform_indices = @transform_6, window_bounds = array<i64: 512, 128>}, {pipeline_mode = #tpu.pipeline_mode<synchronous>, transform_indices = @transform_7, window_bounds = array<i64: 1, 128>}, {transform_indices = @transform_8, window_bounds = array<i64: 16, 128>}]} {
    %c0 = arith.constant 0 : index
    %c0_0 = arith.constant 0 : index
    %0 = vector.load %arg2[%c0, %c0_0] : memref<16x32xf32, #tpu.memory_space<vmem>>, vector<16x32xf32>
    %1 = arith.truncf %0 : vector<16x32xf32> to vector<16x32xbf16>
    %c0_1 = arith.constant 0 : index
    %c0_2 = arith.constant 0 : index
    %2 = vector.load %arg3[%c0_1, %c0_2] : memref<32x1024xbf16, #tpu.memory_space<vmem>>, vector<32x1024xbf16>
    %cst = arith.constant dense<0.000000e+00> : vector<16x1024xf32>
    %3 = tpu.matmul %1, %2, %cst {dimension_numbers = #tpu.dot_dimension_numbers<[1], [0], [0], [1], [0, 0, 1, 1], [], []>} : vector<16x32xbf16>, vector<32x1024xbf16>, vector<16x1024xf32> -> vector<16x1024xf32>
    %c0_3 = arith.constant 0 : index
    %c0_4 = arith.constant 0 : index
    %4 = vector.load %arg4[%c0_3, %c0_4] : memref<1x1024xf32, #tpu.memory_space<vmem>>, vector<1x1024xf32>
    %5 = vector.broadcast %4 : vector<1x1024xf32> to vector<16x1024xf32>
    %6 = arith.addf %3, %5 : vector<16x1024xf32>
    %c0_5 = arith.constant 0 : index
    %7 = memref.load %arg1[%c0_5] : memref<2xf32, #tpu.memory_space<smem>>
    %cst_6 = arith.constant 0.000000e+00 : f32
    %8 = vector.broadcast %cst_6 : f32 to vector<16x1024xf32>
    %9 = arith.cmpf ogt, %6, %8 : vector<16x1024xf32>
    %10 = vector.broadcast %7 : f32 to vector<16x1024xf32>
    %11 = arith.mulf %10, %6 : vector<16x1024xf32>
    %12 = arith.select %9, %6, %11 : vector<16x1024xi1>, vector<16x1024xf32>
    %13 = arith.truncf %12 : vector<16x1024xf32> to vector<16x1024xbf16>
    %c0_7 = arith.constant 0 : index
    %c0_8 = arith.constant 0 : index
    %14 = vector.load %arg5[%c0_7, %c0_8] : memref<1024x512xbf16, #tpu.memory_space<vmem>>, vector<1024x512xbf16>
    %cst_9 = arith.constant dense<0.000000e+00> : vector<16x512xf32>
    %15 = tpu.matmul %13, %14, %cst_9 {dimension_numbers = #tpu.dot_dimension_numbers<[1], [0], [0], [1], [0, 0, 1, 1], [], []>} : vector<16x1024xbf16>, vector<1024x512xbf16>, vector<16x512xf32> -> vector<16x512xf32>
    %c0_10 = arith.constant 0 : index
    %c0_11 = arith.constant 0 : index
    %16 = vector.load %arg6[%c0_10, %c0_11] : memref<1x512xf32, #tpu.memory_space<vmem>>, vector<1x512xf32>
    %17 = vector.broadcast %16 : vector<1x512xf32> to vector<16x512xf32>
    %18 = arith.addf %15, %17 : vector<16x512xf32>
    %c1 = arith.constant 1 : index
    %19 = memref.load %arg1[%c1] : memref<2xf32, #tpu.memory_space<smem>>
    %cst_12 = arith.constant 0.000000e+00 : f32
    %20 = vector.broadcast %cst_12 : f32 to vector<16x512xf32>
    %21 = arith.cmpf ogt, %18, %20 : vector<16x512xf32>
    %22 = vector.broadcast %19 : f32 to vector<16x512xf32>
    %23 = arith.mulf %22, %18 : vector<16x512xf32>
    %24 = arith.select %21, %18, %23 : vector<16x512xi1>, vector<16x512xf32>
    %25 = arith.truncf %24 : vector<16x512xf32> to vector<16x512xbf16>
    %c0_13 = arith.constant 0 : index
    %c0_14 = arith.constant 0 : index
    %26 = vector.load %arg7[%c0_13, %c0_14] : memref<512x128xbf16, #tpu.memory_space<vmem>>, vector<512x128xbf16>
    %cst_15 = arith.constant dense<0.000000e+00> : vector<16x128xf32>
    %27 = tpu.matmul %25, %26, %cst_15 {dimension_numbers = #tpu.dot_dimension_numbers<[1], [0], [0], [1], [0, 0, 1, 1], [], []>} : vector<16x512xbf16>, vector<512x128xbf16>, vector<16x128xf32> -> vector<16x128xf32>
    %c0_16 = arith.constant 0 : index
    %c0_17 = arith.constant 0 : index
    %28 = vector.load %arg8[%c0_16, %c0_17] : memref<1x128xf32, #tpu.memory_space<vmem>>, vector<1x128xf32>
    %29 = vector.broadcast %28 : vector<1x128xf32> to vector<16x128xf32>
    %30 = arith.addf %27, %29 : vector<16x128xf32>
    %cst_18 = arith.constant dense<0xFF800000> : vector<16xf32>
    %31 = vector.multi_reduction <maximumf>, %30, %cst_18 [1] : vector<16x128xf32> to vector<16xf32>
    %32 = vector.shape_cast %31 : vector<16xf32> to vector<16x1xf32>
    %33 = vector.broadcast %32 : vector<16x1xf32> to vector<16x128xf32>
    %34 = arith.subf %30, %33 : vector<16x128xf32>
    %35 = math.exp %34 : vector<16x128xf32>
    %cst_19 = arith.constant dense<0.000000e+00> : vector<16xf32>
    %36 = vector.multi_reduction <add>, %35, %cst_19 [1] : vector<16x128xf32> to vector<16xf32>
    %37 = vector.shape_cast %36 : vector<16xf32> to vector<16x1xf32>
    %38 = tpu.reciprocal %37 : vector<16x1xf32> -> vector<16x1xf32>
    %39 = vector.broadcast %38 : vector<16x1xf32> to vector<16x128xf32>
    %40 = arith.mulf %35, %39 : vector<16x128xf32>
    %41 = arith.truncf %40 : vector<16x128xf32> to vector<16x128xbf16>
    %c0_20 = arith.constant 0 : index
    %c0_21 = arith.constant 0 : index
    %42 = vector.load %arg9[%c0_20, %c0_21] : memref<16x128xbf16, #tpu.memory_space<vmem>>, vector<16x128xbf16>
    tpu.vector_store %arg9[%c0_20, %c0_21], %41 {strides = array<i32>} : memref<16x128xbf16, #tpu.memory_space<vmem>>, vector<16x128xbf16>,
    return
  }
  func.func @transform_0(%arg0: i32) -> i32 {
    %c0_i32 = arith.constant 0 : i32
    %c0_i32_0 = arith.constant 0 : i32
    return %c0_i32 : i32
  }
  func.func @transform_1(%arg0: i32) -> (i32, i32) {
    %c0_i32 = arith.constant 0 : i32
    %c0_i32_0 = arith.constant 0 : i32
    return %arg0, %c0_i32 : i32, i32
  }
  func.func @transform_2(%arg0: i32) -> (i32, i32) {
    %c0_i32 = arith.constant 0 : i32
    %c0_i32_0 = arith.constant 0 : i32
    %c0_i32_1 = arith.constant 0 : i32
    return %c0_i32, %c0_i32_0 : i32, i32
  }
  func.func @transform_3(%arg0: i32) -> (i32, i32) {
    %c0_i32 = arith.constant 0 : i32
    %c0_i32_0 = arith.constant 0 : i32
    %c0_i32_1 = arith.constant 0 : i32
    return %c0_i32, %c0_i32_0 : i32, i32
  }
  func.func @transform_4(%arg0: i32) -> (i32, i32) {
    %c0_i32 = arith.constant 0 : i32
    %c0_i32_0 = arith.constant 0 : i32
    %c0_i32_1 = arith.constant 0 : i32
    return %c0_i32, %c0_i32_0 : i32, i32
  }
  func.func @transform_5(%arg0: i32) -> (i32, i32) {
    %c0_i32 = arith.constant 0 : i32
    %c0_i32_0 = arith.constant 0 : i32
    %c0_i32_1 = arith.constant 0 : i32
    return %c0_i32, %c0_i32_0 : i32, i32
  }
  func.func @transform_6(%arg0: i32) -> (i32, i32) {
    %c0_i32 = arith.constant 0 : i32
    %c0_i32_0 = arith.constant 0 : i32
    %c0_i32_1 = arith.constant 0 : i32
    return %c0_i32, %c0_i32_0 : i32, i32
  }
  func.func @transform_7(%arg0: i32) -> (i32, i32) {
    %c0_i32 = arith.constant 0 : i32
    %c0_i32_0 = arith.constant 0 : i32
    %c0_i32_1 = arith.constant 0 : i32
    return %c0_i32, %c0_i32_0 : i32, i32
  }
  func.func @transform_8(%arg0: i32) -> (i32, i32) {
    %c0_i32 = arith.constant 0 : i32
    %c0_i32_0 = arith.constant 0 : i32
    return %arg0, %c0_i32 : i32, i32
  }
}

</mosaic_0001>

<llo_original>
// kernel: baseline_model1_forward.1
$region0: #{baseline_model1_forward.1}
  #allocation0 [shape = 'u32[]', space=smem, size = 0x4, offset = 0x4, fixed_abs, tag = 'smem constant byte address 0x4 - core index']
  #allocation1 [shape = 'u32[72,128]{1,0:T(1,128)}', space=vmem, size = 0x9000, scoped, tag = 'internal scratch']
  %s0 = inlined_call_operand.vmem [shape: f32[2], index: 0, kind: input, shape index: {}]
  %s1 = inlined_call_operand.vmem [shape: f32[16,32], index: 1, kind: input, shape index: {}]
  %s2 = inlined_call_operand.hbm [shape: bf16[32,1024], index: 2, kind: input, shape index: {}]
  %s3 = inlined_call_operand.vmem [shape: f32[1,1024], index: 3, kind: input, shape index: {}]
  %s4 = inlined_call_operand.hbm [shape: bf16[1024,512], index: 4, kind: input, shape index: {}]
  %s5 = inlined_call_operand.vmem [shape: f32[1,512], index: 5, kind: input, shape index: {}]
  %s6 = inlined_call_operand.hbm [shape: bf16[512,128], index: 6, kind: input, shape index: {}]
  %s7 = inlined_call_operand.vmem [shape: f32[1,128], index: 7, kind: input, shape index: {}]
  %s8 = inlined_call_operand.vmem [shape: bf16[16,128], index: 8, kind: output, shape index: {}]
  %s9 = sld [smem:[#allocation0]]
  $region58: #{baseline_model1_forward.1} parent=0
    _
  %s11 = ssub.s32 1, %s9
  %s12 = scalar_select 0, %s11, %s9
  $region1: #{baseline_model1_forward.1} parent=0
    #allocation2 [shape = 'u8[512]{0}', space=smem, size = 0x200, scoped, tag = 'input window, operand 0, single buffered']
    #allocation3 [shape = 's32[1]{0}', space=sflag, size = 0x4, scoped, tag = 'scoped memory for baseline_model1_forward.1']
    #allocation4 [shape = 's32[1]{0}', space=sflag, size = 0x4, scoped, tag = 'scoped memory for baseline_model1_forward.1']
    #allocation5 [shape = 'u8[65536]{0}', space=vmem, size = 0x10000, scoped, tag = 'input window, operand 2, single buffered']
    #allocation6 [shape = 'u8[1048576]{0}', space=vmem, size = 0x100000, scoped, tag = 'input window, operand 4, single buffered']
    #allocation7 [shape = 's32[1]{0}', space=sflag, size = 0x4, scoped, tag = 'scoped memory for baseline_model1_forward.1']
    #allocation8 [shape = 'u8[131072]{0}', space=vmem, size = 0x20000, scoped, tag = 'input window, operand 6, single buffered']
    %13 = vsyncpa [#allocation4], 0
    %14 = vsyncpa [#allocation3], 0
    %15 = vsyncpa [#allocation7], 0
    // Predicated region
    $region2: #{baseline_model1_forward.1} parent=1 // pred_check
      _
    $region3: #{baseline_model1_forward.1} parent=1 // pred_check_branch
      %17 = sbr.rel (0) target = $region5
    $region4: #{baseline_model1_forward.1} parent=1 // pred_region
      %19 = vsyncadd [#allocation4], 0
      %s21 = sshll.u32 %s0, 4
      %s22 = int_to_ptr.vmem [resolvable:$true] %s21
      %24 = dma.vmem_to_smem %s22, 16, [#allocation2], [#allocation4]
    $region5: #{baseline_model1_forward.1} parent=1 // pred_fallthru
      _
    // Predicated region
    $region6: #{baseline_model1_forward.1} parent=1 // pred_check
      _
    $region7: #{baseline_model1_forward.1} parent=1 // pred_check_branch
      %26 = sbr.rel (0) target = $region9
    $region8: #{baseline_model1_forward.1} parent=1 // pred_region
      _
    $region9: #{baseline_model1_forward.1} parent=1 // pred_fallthru
      _
    // Predicated region
    $region10: #{baseline_model1_forward.1} parent=1 // pred_check
      _
    $region11: #{baseline_model1_forward.1} parent=1 // pred_check_branch
      %28 = sbr.rel (0) target = $region13
    $region12: #{baseline_model1_forward.1} parent=1 // pred_region
      %30 = vsyncadd [#allocation3], 0
      %s31 = sshll.u32 %s2, 4
      %s32 = int_to_ptr.hbm [resolvable:$true] %s31
      %s33 = sshll.u32 [#allocation5], 4
      %s34 = int_to_ptr.vmem [resolvable:$true] %s33
      %39 = dma.hbm_to_vmem [thread:$0]  %s32, 2048, %s34, [#allocation3], 512, 512, 32
    $region13: #{baseline_model1_forward.1} parent=1 // pred_fallthru
      _
    // Predicated region
    $region14: #{baseline_model1_forward.1} parent=1 // pred_check
      _
    $region15: #{baseline_model1_forward.1} parent=1 // pred_check_branch
      %41 = sbr.rel (0) target = $region17
    $region16: #{baseline_model1_forward.1} parent=1 // pred_region
      _
    $region17: #{baseline_model1_forward.1} parent=1 // pred_fallthru
      _
    // Predicated region
    $region18: #{baseline_model1_forward.1} parent=1 // pred_check
      _
    $region19: #{baseline_model1_forward.1} parent=1 // pred_check_branch
      %43 = sbr.rel (0) target = $region21
    $region20: #{baseline_model1_forward.1} parent=1 // pred_region
      %45 = vsyncadd [#allocation7], 0
      %s46 = sshll.u32 %s4, 4
      %s47 = int_to_ptr.hbm [resolvable:$true] %s46
      %s48 = sshll.u32 [#allocation6], 4
      %s49 = int_to_ptr.vmem [resolvable:$true] %s48
      %54 = dma.hbm_to_vmem [thread:$0]  %s47, 32768, %s49, [#allocation7], 256, 256, 16
    $region21: #{baseline_model1_forward.1} parent=1 // pred_fallthru
      _
    // Predicated region
    $region22: #{baseline_model1_forward.1} parent=1 // pred_check
      _
    $region23: #{baseline_model1_forward.1} parent=1 // pred_check_branch
      %56 = sbr.rel (0) target = $region25
    $region24: #{baseline_model1_forward.1} parent=1 // pred_region
      _
    $region25: #{baseline_model1_forward.1} parent=1 // pred_fallthru
      _
    // Predicated region
    $region26: #{baseline_model1_forward.1} parent=1 // pred_check
      _
    $region27: #{baseline_model1_forward.1} parent=1 // pred_check_branch
      %58 = sbr.rel (0) target = $region29
    $region28: #{baseline_model1_forward.1} parent=1 // pred_region
      %60 = vsyncadd [#allocation7], 0
      %s61 = sshll.u32 %s6, 4
      %s62 = int_to_ptr.hbm [resolvable:$true] %s61
      %s63 = sshll.u32 [#allocation8], 4
      %s64 = int_to_ptr.vmem [resolvable:$true] %s63
      %69 = dma.hbm_to_vmem [thread:$0]  %s62, 4096, %s64, [#allocation7], 64, 64, 4
    $region29: #{baseline_model1_forward.1} parent=1 // pred_fallthru
      _
    // Predicated region
    $region30: #{baseline_model1_forward.1} parent=1 // pred_check
      _
    $region31: #{baseline_model1_forward.1} parent=1 // pred_check_branch
      %71 = sbr.rel (0) target = $region33
    $region32: #{baseline_model1_forward.1} parent=1 // pred_region
      _
    $region33: #{baseline_model1_forward.1} parent=1 // pred_fallthru
      _
    // Predicated region
    $region34: #{baseline_model1_forward.1} parent=1 // pred_check
      _
    $region35: #{baseline_model1_forward.1} parent=1 // pred_check_branch
      %73 = sbr.rel (0) target = $region37
    $region36: #{baseline_model1_forward.1} parent=1 // pred_region
      %75 = dma.done [#allocation4], 16
    $region37: #{baseline_model1_forward.1} parent=1 // pred_fallthru
      _
    // Predicated region
    $region38: #{baseline_model1_forward.1} parent=1 // pred_check
      _
    $region39: #{baseline_model1_forward.1} parent=1 // pred_check_branch
      %77 = sbr.rel (0) target = $region41
    $region40: #{baseline_model1_forward.1} parent=1 // pred_region
      %79 = dma.done [#allocation3], 2048
    $region41: #{baseline_model1_forward.1} parent=1 // pred_fallthru
      _
    // Predicated region
    $region42: #{baseline_model1_forward.1} parent=1 // pred_check
      _
    $region43: #{baseline_model1_forward.1} parent=1 // pred_check_branch
      %81 = sbr.rel (0) target = $region45
    $region44: #{baseline_model1_forward.1} parent=1 // pred_region
      %83 = dma.done [#allocation7], 32768
    $region45: #{baseline_model1_forward.1} parent=1 // pred_fallthru
      _
    // Predicated region
    $region46: #{baseline_model1_forward.1} parent=1 // pred_check
      _
    $region47: #{baseline_model1_forward.1} parent=1 // pred_check_branch
      %85 = sbr.rel (0) target = $region49
    $region48: #{baseline_model1_forward.1} parent=1 // pred_region
      %87 = dma.done [#allocation7], 4096
    $region49: #{baseline_model1_forward.1} parent=1 // pred_fallthru
      _
    %88 = sfence
    %v90 = vld [vmem:[%s1] sm:$0xff]
    %v91 = vld [vmem:[%s1 + $0x8] sm:$0xff]
    %v92 = vpack.c.bf16 %v91, %v90
    %v93 = vld [vmem:[#allocation5] sm:$0xff]
    %v94 = vld [vmem:[#allocation5 + $0x8] sm:$0xff]
    %v95 = vld [vmem:[#allocation5 + $0x10] sm:$0xff]
    %v96 = vld [vmem:[#allocation5 + $0x18] sm:$0xff]
    %v97 = vld [vmem:[#allocation5 + $0x20] sm:$0xff]
    %v98 = vld [vmem:[#allocation5 + $0x28] sm:$0xff]
    %v99 = vld [vmem:[#allocation5 + $0x30] sm:$0xff]
    %v100 = vld [vmem:[#allocation5 + $0x38] sm:$0xff]
    %v101 = vld [vmem:[#allocation5 + $0x40] sm:$0xff]
    %v102 = vld [vmem:[#allocation5 + $0x48] sm:$0xff]
    %v103 = vld [vmem:[#allocation5 + $0x50] sm:$0xff]
    %v104 = vld [vmem:[#allocation5 + $0x58] sm:$0xff]
    %v105 = vld [vmem:[#allocation5 + $0x60] sm:$0xff]
    %v106 = vld [vmem:[#allocation5 + $0x68] sm:$0xff]
    %v107 = vld [vmem:[#allocation5 + $0x70] sm:$0xff]
    %v108 = vld [vmem:[#allocation5 + $0x78] sm:$0xff]
    %v109 = vld [vmem:[%s3] sm:$0xff]
    %v111 = vperm.slane %v109, 0
    %v112 = vperm.slane %v109, 1
    %v113 = vperm.slane %v109, 2
    %v114 = vperm.slane %v109, 3
    %v115 = vperm.slane %v109, 4
    %v116 = vperm.slane %v109, 5
    %v117 = vperm.slane %v109, 6
    %v118 = vperm.slane %v109, 7
    %v143 = vunpack.c.l.b16 %v93
    %v144 = vunpack.c.h.b16 %v93
    %v145 = vunpack.c.l.b16 %v94
    %v146 = vunpack.c.h.b16 %v94
    %v147 = vunpack.c.l.b16 %v95
    %v148 = vunpack.c.h.b16 %v95
    %v149 = vunpack.c.l.b16 %v96
    %v150 = vunpack.c.h.b16 %v96
    %v151 = vunpack.c.l.b16 %v97
    %v152 = vunpack.c.h.b16 %v97
    %v153 = vunpack.c.l.b16 %v98
    %v154 = vunpack.c.h.b16 %v98
    %v155 = vunpack.c.l.b16 %v99
    %v156 = vunpack.c.h.b16 %v99
    %v157 = vunpack.c.l.b16 %v100
    %v158 = vunpack.c.h.b16 %v100
    %v159 = vunpack.c.l.b16 %v101
    %v160 = vunpack.c.h.b16 %v101
    %v161 = vunpack.c.l.b16 %v102
    %v162 = vunpack.c.h.b16 %v102
    %v163 = vunpack.c.l.b16 %v103
    %v164 = vunpack.c.h.b16 %v103
    %v165 = vunpack.c.l.b16 %v104
    %v166 = vunpack.c.h.b16 %v104
    %v167 = vunpack.c.l.b16 %v105
    %v168 = vunpack.c.h.b16 %v105
    %v169 = vunpack.c.l.b16 %v106
    %v170 = vunpack.c.h.b16 %v106
    %v171 = vunpack.c.l.b16 %v107
    %v172 = vunpack.c.h.b16 %v107
    %v173 = vunpack.c.l.b16 %v108
    %v174 = vunpack.c.h.b16 %v108
    %v175 = vpack.c.b16 %v151, %v143
    %v176 = vpack.c.b16 %v152, %v144
    %v177 = vpack.c.b16 %v153, %v145
    %v178 = vpack.c.b16 %v154, %v146
    %v179 = vpack.c.b16 %v155, %v147
    %v180 = vpack.c.b16 %v156, %v148
    %v181 = vpack.c.b16 %v157, %v149
    %v182 = vpack.c.b16 %v158, %v150
    %v183 = vpack.c.b16 %v167, %v159
    %v184 = vpack.c.b16 %v168, %v160
    %v185 = vpack.c.b16 %v169, %v161
    %v186 = vpack.c.b16 %v170, %v162
    %v187 = vpack.c.b16 %v171, %v163
    %v188 = vpack.c.b16 %v172, %v164
    %v189 = vpack.c.b16 %v173, %v165
    %v190 = vpack.c.b16 %v174, %v166
    %vm207 = vcmask 261120
    %v209 = vsel %vm207, %v92, 0
    %211 = vmatpush.bf16.msra.mxu0 0
    %212 = vmatpush.bf16.msra.mxu0 0
    %213 = vmatpush.bf16.msra.mxu0 0
    %214 = vmatpush.bf16.msra.mxu0 0
    %215 = vmatpush.bf16.msra.mxu0 0
    %216 = vmatpush.bf16.msra.mxu0 0
    %217 = vmatpush.bf16.msra.mxu0 %v183
    %218 = vmatpush.bf16.msra.mxu0 %v175
    %219 = vmatmul.bf16.gmra.mxu0 %v209
    %v220 = vpop.f32.mrf.mxu0
    %v221 = vadd.f32 %v111, %v220
    %v222 = vpop.f32.mrf.mxu0
    %v223 = vadd.f32 %v111, %v222
    %224 = vdwg.mxu0
    %225 = vmatpush.bf16.msra.mxu0 0
    %226 = vmatpush.bf16.msra.mxu0 0
    %227 = vmatpush.bf16.msra.mxu0 0
    %228 = vmatpush.bf16.msra.mxu0 0
    %229 = vmatpush.bf16.msra.mxu0 0
    %230 = vmatpush.bf16.msra.mxu0 0
    %231 = vmatpush.bf16.msra.mxu0 %v184
    %232 = vmatpush.bf16.msra.mxu0 %v176
    %233 = vmatmul.bf16.gmra.mxu0 %v209
    %v234 = vpop.f32.mrf.mxu0
    %v235 = vadd.f32 %v112, %v234
    %v236 = vpop.f32.mrf.mxu0
    %v237 = vadd.f32 %v112, %v236
    %238 = vdwg.mxu0
    %239 = vmatpush.bf16.msra.mxu0 0
    %240 = vmatpush.bf16.msra.mxu0 0
    %241 = vmatpush.bf16.msra.mxu0 0
    %242 = vmatpush.bf16.msra.mxu0 0
    %243 = vmatpush.bf16.msra.mxu0 0
    %244 = vmatpush.bf16.msra.mxu0 0
    %245 = vmatpush.bf16.msra.mxu0 %v185
    %246 = vmatpush.bf16.msra.mxu0 %v177
    %247 = vmatmul.bf16.gmra.mxu0 %v209
    %v248 = vpop.f32.mrf.mxu0
    %v249 = vadd.f32 %v113, %v248
    %v250 = vpop.f32.mrf.mxu0
    %v251 = vadd.f32 %v113, %v250
    %252 = vdwg.mxu0
    %253 = vmatpush.bf16.msra.mxu0 0
    %254 = vmatpush.bf16.msra.mxu0 0
    %255 = vmatpush.bf16.msra.mxu0 0
    %256 = vmatpush.bf16.msra.mxu0 0
    %257 = vmatpush.bf16.msra.mxu0 0
    %258 = vmatpush.bf16.msra.mxu0 0
    %259 = vmatpush.bf16.msra.mxu0 %v186
    %260 = vmatpush.bf16.msra.mxu0 %v178
    %261 = vmatmul.bf16.gmra.mxu0 %v209
    %v262 = vpop.f32.mrf.mxu0
    %v263 = vadd.f32 %v114, %v262
    %v264 = vpop.f32.mrf.mxu0
    %v265 = vadd.f32 %v114, %v264
    %266 = vdwg.mxu0
    %267 = vmatpush.bf16.msra.mxu0 0
    %268 = vmatpush.bf16.msra.mxu0 0
    %269 = vmatpush.bf16.msra.mxu0 0
    %270 = vmatpush.bf16.msra.mxu0 0
    %271 = vmatpush.bf16.msra.mxu0 0
    %272 = vmatpush.bf16.msra.mxu0 0
    %273 = vmatpush.bf16.msra.mxu0 %v187
    %274 = vmatpush.bf16.msra.mxu0 %v179
    %275 = vmatmul.bf16.gmra.mxu0 %v209
    %v276 = vpop.f32.mrf.mxu0
    %v277 = vadd.f32 %v115, %v276
    %v278 = vpop.f32.mrf.mxu0
    %v279 = vadd.f32 %v115, %v278
    %280 = vdwg.mxu0
    %281 = vmatpush.bf16.msra.mxu0 0
    %282 = vmatpush.bf16.msra.mxu0 0
    %283 = vmatpush.bf16.msra.mxu0 0
    %284 = vmatpush.bf16.msra.mxu0 0
    %285 = vmatpush.bf16.msra.mxu0 0
    %286 = vmatpush.bf16.msra.mxu0 0
    %287 = vmatpush.bf16.msra.mxu0 %v188
    %288 = vmatpush.bf16.msra.mxu0 %v180
    %289 = vmatmul.bf16.gmra.mxu0 %v209
    %v290 = vpop.f32.mrf.mxu0
    %v291 = vadd.f32 %v116, %v290
    %v292 = vpop.f32.mrf.mxu0
    %v293 = vadd.f32 %v116, %v292
    %294 = vdwg.mxu0
    %295 = vmatpush.bf16.msra.mxu0 0
    %296 = vmatpush.bf16.msra.mxu0 0
    %297 = vmatpush.bf16.msra.mxu0 0
    %298 = vmatpush.bf16.msra.mxu0 0
    %299 = vmatpush.bf16.msra.mxu0 0
    %300 = vmatpush.bf16.msra.mxu0 0
    %301 = vmatpush.bf16.msra.mxu0 %v189
    %302 = vmatpush.bf16.msra.mxu0 %v181
    %303 = vmatmul.bf16.gmra.mxu0 %v209
    %v304 = vpop.f32.mrf.mxu0
    %v305 = vadd.f32 %v117, %v304
    %v306 = vpop.f32.mrf.mxu0
    %v307 = vadd.f32 %v117, %v306
    %308 = vdwg.mxu0
    %309 = vmatpush.bf16.msra.mxu0 0
    %310 = vmatpush.bf16.msra.mxu0 0
    %311 = vmatpush.bf16.msra.mxu0 0
    %312 = vmatpush.bf16.msra.mxu0 0
    %313 = vmatpush.bf16.msra.mxu0 0
    %314 = vmatpush.bf16.msra.mxu0 0
    %315 = vmatpush.bf16.msra.mxu0 %v190
    %316 = vmatpush.bf16.msra.mxu0 %v182
    %317 = vmatmul.bf16.gmra.mxu0 %v209
    %v318 = vpop.f32.mrf.mxu0
    %v319 = vadd.f32 %v118, %v318
    %v320 = vpop.f32.mrf.mxu0
    %v321 = vadd.f32 %v118, %v320
    %322 = vdwg.mxu0
    %s323 = sld [smem:[#allocation2]]
    %vm324 = vcmp.gt.f32.partialorder %v221, 0.0
    %vm325 = vcmp.gt.f32.partialorder %v235, 0.0
    %vm326 = vcmp.gt.f32.partialorder %v249, 0.0
    %vm327 = vcmp.gt.f32.partialorder %v263, 0.0
    %vm328 = vcmp.gt.f32.partialorder %v277, 0.0
    %vm329 = vcmp.gt.f32.partialorder %v291, 0.0
    %vm330 = vcmp.gt.f32.partialorder %v305, 0.0
    %vm331 = vcmp.gt.f32.partialorder %v319, 0.0
    %vm332 = vcmp.gt.f32.partialorder %v223, 0.0
    %vm333 = vcmp.gt.f32.partialorder %v237, 0.0
    %vm334 = vcmp.gt.f32.partialorder %v251, 0.0
    %vm335 = vcmp.gt.f32.partialorder %v265, 0.0
    %vm336 = vcmp.gt.f32.partialorder %v279, 0.0
    %vm337 = vcmp.gt.f32.partialorder %v293, 0.0
    %vm338 = vcmp.gt.f32.partialorder %v307, 0.0
    %vm339 = vcmp.gt.f32.partialorder %v321, 0.0
    %v340 = vstv %s323
    %v341 = vmul.f32 %v340, %v221
    %v342 = vmul.f32 %v340, %v235
    %v343 = vmul.f32 %v340, %v249
    %v344 = vmul.f32 %v340, %v263
    %v345 = vmul.f32 %v340, %v277
    %v346 = vmul.f32 %v340, %v291
    %v347 = vmul.f32 %v340, %v305
    %v348 = vmul.f32 %v340, %v319
    %v349 = vmul.f32 %v340, %v223
    %v350 = vmul.f32 %v340, %v237
    %v351 = vmul.f32 %v340, %v251
    %v352 = vmul.f32 %v340, %v265
    %v353 = vmul.f32 %v340, %v279
    %v354 = vmul.f32 %v340, %v293
    %v355 = vmul.f32 %v340, %v307
    %v356 = vmul.f32 %v340, %v321
    %v357 = vsel %vm324, %v221, %v341
    %v358 = vsel %vm325, %v235, %v342
    %v359 = vsel %vm326, %v249, %v343
    %v360 = vsel %vm327, %v263, %v344
    %v361 = vsel %vm328, %v277, %v345
    %v362 = vsel %vm329, %v291, %v346
    %v363 = vsel %vm330, %v305, %v347
    %v364 = vsel %vm331, %v319, %v348
    %v365 = vsel %vm332, %v223, %v349
    %v366 = vsel %vm333, %v237, %v350
    %v367 = vsel %vm334, %v251, %v351
    %v368 = vsel %vm335, %v265, %v352
    %v369 = vsel %vm336, %v279, %v353
    %v370 = vsel %vm337, %v293, %v354
    %v371 = vsel %vm338, %v307, %v355
    %v372 = vsel %vm339, %v321, %v356
    %v373 = vpack.c.bf16 %v365, %v357
    %v374 = vpack.c.bf16 %v366, %v358
    %v375 = vpack.c.bf16 %v367, %v359
    %v376 = vpack.c.bf16 %v368, %v360
    %v377 = vpack.c.bf16 %v369, %v361
    %v378 = vpack.c.bf16 %v370, %v362
    %v379 = vpack.c.bf16 %v371, %v363
    %v380 = vpack.c.bf16 %v372, %v364
    %v381 = vld [vmem:[#allocation6] sm:$0xff]
    %v382 = vld [vmem:[#allocation6 + $0x8] sm:$0xff]
    %v383 = vld [vmem:[#allocation6 + $0x10] sm:$0xff]
    %v384 = vld [vmem:[#allocation6 + $0x18] sm:$0xff]
    %v385 = vld [vmem:[#allocation6 + $0x20] sm:$0xff]
    %v386 = vld [vmem:[#allocation6 + $0x28] sm:$0xff]
    %v387 = vld [vmem:[#allocation6 + $0x30] sm:$0xff]
    %v388 = vld [vmem:[#allocation6 + $0x38] sm:$0xff]
    %v389 = vld [vmem:[#allocation6 + $0x40] sm:$0xff]
    %v390 = vld [vmem:[#allocation6 + $0x48] sm:$0xff]
    %v391 = vld [vmem:[#allocation6 + $0x50] sm:$0xff]
    %v392 = vld [vmem:[#allocation6 + $0x58] sm:$0xff]
    %v393 = vld [vmem:[#allocation6 + $0x60] sm:$0xff]
    %v394 = vld [vmem:[#allocation6 + $0x68] sm:$0xff]
    %v395 = vld [vmem:[#allocation6 + $0x70] sm:$0xff]
    %v396 = vld [vmem:[#allocation6 + $0x78] sm:$0xff]
    %v397 = vld [vmem:[#allocation6 + $0x80] sm:$0xff]
    %v398 = vld [vmem:[#allocation6 + $0x88] sm:$0xff]
    %v399 = vld [vmem:[#allocation6 + $0x90] sm:$0xff]
    %v400 = vld [vmem:[#allocation6 + $0x98] sm:$0xff]
    %v401 = vld [vmem:[#allocation6 + $0xa0] sm:$0xff]
    %v402 = vld [vmem:[#allocation6 + $0xa8] sm:$0xff]
    %v403 = vld [vmem:[#allocation6 + $0xb0] sm:$0xff]
    %v404 = vld [vmem:[#allocation6 + $0xb8] sm:$0xff]
    %v405 = vld [vmem:[#allocation6 + $0xc0] sm:$0xff]
    %v406 = vld [vmem:[#allocation6 + $0xc8] sm:$0xff]
    %v407 = vld [vmem:[#allocation6 + $0xd0] sm:$0xff]
    %v408 = vld [vmem:[#allocation6 + $0xd8] sm:$0xff]
    %v409 = vld [vmem:[#allocation6 + $0xe0] sm:$0xff]
    %v410 = vld [vmem:[#allocation6 + $0xe8] sm:$0xff]
    %v411 = vld [vmem:[#allocation6 + $0xf0] sm:$0xff]
    %v412 = vld [vmem:[#allocation6 + $0xf8] sm:$0xff]
    %v413 = vld [vmem:[#allocation6 + $0x100] sm:$0xff]
    %v414 = vld [vmem:[#allocation6 + $0x108] sm:$0xff]
    %v415 = vld [vmem:[#allocation6 + $0x110] sm:$0xff]
    %v416 = vld [vmem:[#allocation6 + $0x118] sm:$0xff]
    %v417 = vld [vmem:[#allocation6 + $0x120] sm:$0xff]
    %v418 = vld [vmem:[#allocation6 + $0x128] sm:$0xff]
    %v419 = vld [vmem:[#allocation6 + $0x130] sm:$0xff]
    %v420 = vld [vmem:[#allocation6 + $0x138] sm:$0xff]
    %v421 = vld [vmem:[#allocation6 + $0x140] sm:$0xff]
    %v422 = vld [vmem:[#allocation6 + $0x148] sm:$0xff]
    %v423 = vld [vmem:[#allocation6 + $0x150] sm:$0xff]
    %v424 = vld [vmem:[#allocation6 + $0x158] sm:$0xff]
    %v425 = vld [vmem:[#allocation6 + $0x160] sm:$0xff]
    %v426 = vld [vmem:[#allocation6 + $0x168] sm:$0xff]
    %v427 = vld [vmem:[#allocation6 + $0x170] sm:$0xff]
    %v428 = vld [vmem:[#allocation6 + $0x178] sm:$0xff]
    %v429 = vld [vmem:[#allocation6 + $0x180] sm:$0xff]
    %v430 = vld [vmem:[#allocation6 + $0x188] sm:$0xff]
    %v431 = vld [vmem:[#allocation6 + $0x190] sm:$0xff]
    %v432 = vld [vmem:[#allocation6 + $0x198] sm:$0xff]
    %v433 = vld [vmem:[#allocation6 + $0x1a0] sm:$0xff]
    %v434 = vld [vmem:[#allocation6 + $0x1a8] sm:$0xff]
    %v435 = vld [vmem:[#allocation6 + $0x1b0] sm:$0xff]
    %v436 = vld [vmem:[#allocation6 + $0x1b8] sm:$0xff]
    %v437 = vld [vmem:[#allocation6 + $0x1c0] sm:$0xff]
    %v438 = vld [vmem:[#allocation6 + $0x1c8] sm:$0xff]
    %v439 = vld [vmem:[#allocation6 + $0x1d0] sm:$0xff]
    %v440 = vld [vmem:[#allocation6 + $0x1d8] sm:$0xff]
    %v441 = vld [vmem:[#allocation6 + $0x1e0] sm:$0xff]
    %v442 = vld [vmem:[#allocation6 + $0x1e8] sm:$0xff]
    %v443 = vld [vmem:[#allocation6 + $0x1f0] sm:$0xff]
    %v444 = vld [vmem:[#allocation6 + $0x1f8] sm:$0xff]
    %v445 = vld [vmem:[#allocation6 + $0x200] sm:$0xff]
    %v446 = vld [vmem:[#allocation6 + $0x208] sm:$0xff]
    %v447 = vld [vmem:[#allocation6 + $0x210] sm:$0xff]
    %v448 = vld [vmem:[#allocation6 + $0x218] sm:$0xff]
    %v449 = vld [vmem:[#allocation6 + $0x220] sm:$0xff]
    %v450 = vld [vmem:[#allocation6 + $0x228] sm:$0xff]
    %v451 = vld [vmem:[#allocation6 + $0x230] sm:$0xff]
    %v452 = vld [vmem:[#allocation6 + $0x238] sm:$0xff]
    %v453 = vld [vmem:[#allocation6 + $0x240] sm:$0xff]
    %v454 = vld [vmem:[#allocation6 + $0x248] sm:$0xff]
    %v455 = vld [vmem:[#allocation6 + $0x250] sm:$0xff]
    %v456 = vld [vmem:[#allocation6 + $0x258] sm:$0xff]
    %v457 = vld [vmem:[#allocation6 + $0x260] sm:$0xff]
    %v458 = vld [vmem:[#allocation6 + $0x268] sm:$0xff]
    %v459 = vld [vmem:[#allocation6 + $0x270] sm:$0xff]
    %v460 = vld [vmem:[#allocation6 + $0x278] sm:$0xff]
    %v461 = vld [vmem:[#allocation6 + $0x280] sm:$0xff]
    %v462 = vld [vmem:[#allocation6 + $0x288] sm:$0xff]
    %v463 = vld [vmem:[#allocation6 + $0x290] sm:$0xff]
    %v464 = vld [vmem:[#allocation6 + $0x298] sm:$0xff]
    %v465 = vld [vmem:[#allocation6 + $0x2a0] sm:$0xff]
    %v466 = vld [vmem:[#allocation6 + $0x2a8] sm:$0xff]
    %v467 = vld [vmem:[#allocation6 + $0x2b0] sm:$0xff]
    %v468 = vld [vmem:[#allocation6 + $0x2b8] sm:$0xff]
    %v469 = vld [vmem:[#allocation6 + $0x2c0] sm:$0xff]
    %v470 = vld [vmem:[#allocation6 + $0x2c8] sm:$0xff]
    %v471 = vld [vmem:[#allocation6 + $0x2d0] sm:$0xff]
    %v472 = vld [vmem:[#allocation6 + $0x2d8] sm:$0xff]
    %v473 = vld [vmem:[#allocation6 + $0x2e0] sm:$0xff]
    %v474 = vld [vmem:[#allocation6 + $0x2e8] sm:$0xff]
    %v475 = vld [vmem:[#allocation6 + $0x2f0] sm:$0xff]
    %v476 = vld [vmem:[#allocation6 + $0x2f8] sm:$0xff]
    %v477 = vld [vmem:[#allocation6 + $0x300] sm:$0xff]
    %v478 = vld [vmem:[#allocation6 + $0x308] sm:$0xff]
    %v479 = vld [vmem:[#allocation6 + $0x310] sm:$0xff]
    %v480 = vld [vmem:[#allocation6 + $0x318] sm:$0xff]
    %v481 = vld [vmem:[#allocation6 + $0x320] sm:$0xff]
    %v482 = vld [vmem:[#allocation6 + $0x328] sm:$0xff]
    %v483 = vld [vmem:[#allocation6 + $0x330] sm:$0xff]
    %v484 = vld [vmem:[#allocation6 + $0x338] sm:$0xff]
    %v485 = vld [vmem:[#allocation6 + $0x340] sm:$0xff]
    %v486 = vld [vmem:[#allocation6 + $0x348] sm:$0xff]
    %v487 = vld [vmem:[#allocation6 + $0x350] sm:$0xff]
    %v488 = vld [vmem:[#allocation6 + $0x358] sm:$0xff]
    %v489 = vld [vmem:[#allocation6 + $0x360] sm:$0xff]
    %v490 = vld [vmem:[#allocation6 + $0x368] sm:$0xff]
    %v491 = vld [vmem:[#allocation6 + $0x370] sm:$0xff]
    %v492 = vld [vmem:[#allocation6 + $0x378] sm:$0xff]
    %v493 = vld [vmem:[#allocation6 + $0x380] sm:$0xff]
    %v494 = vld [vmem:[#allocation6 + $0x388] sm:$0xff]
    %v495 = vld [vmem:[#allocation6 + $0x390] sm:$0xff]
    %v496 = vld [vmem:[#allocation6 + $0x398] sm:$0xff]
    %v497 = vld [vmem:[#allocation6 + $0x3a0] sm:$0xff]
    %v498 = vld [vmem:[#allocation6 + $0x3a8] sm:$0xff]
    %v499 = vld [vmem:[#allocation6 + $0x3b0] sm:$0xff]
    %v500 = vld [vmem:[#allocation6 + $0x3b8] sm:$0xff]
    %v501 = vld [vmem:[#allocation6 + $0x3c0] sm:$0xff]
    %v502 = vld [vmem:[#allocation6 + $0x3c8] sm:$0xff]
    %v503 = vld [vmem:[#allocation6 + $0x3d0] sm:$0xff]
    %v504 = vld [vmem:[#allocation6 + $0x3d8] sm:$0xff]
    %v505 = vld [vmem:[#allocation6 + $0x3e0] sm:$0xff]
    %v506 = vld [vmem:[#allocation6 + $0x3e8] sm:$0xff]
    %v507 = vld [vmem:[#allocation6 + $0x3f0] sm:$0xff]
    %v508 = vld [vmem:[#allocation6 + $0x3f8] sm:$0xff]
    %v509 = vld [vmem:[#allocation6 + $0x400] sm:$0xff]
    %v510 = vld [vmem:[#allocation6 + $0x408] sm:$0xff]
    %v511 = vld [vmem:[#allocation6 + $0x410] sm:$0xff]
    %v512 = vld [vmem:[#allocation6 + $0x418] sm:$0xff]
    %v513 = vld [vmem:[#allocation6 + $0x420] sm:$0xff]
    %v514 = vld [vmem:[#allocation6 + $0x428] sm:$0xff]
    %v515 = vld [vmem:[#allocation6 + $0x430] sm:$0xff]
    %v516 = vld [vmem:[#allocation6 + $0x438] sm:$0xff]
    %v517 = vld [vmem:[#allocation6 + $0x440] sm:$0xff]
    %v518 = vld [vmem:[#allocation6 + $0x448] sm:$0xff]
    %v519 = vld [vmem:[#allocation6 + $0x450] sm:$0xff]
    %v520 = vld [vmem:[#allocation6 + $0x458] sm:$0xff]
    %v521 = vld [vmem:[#allocation6 + $0x460] sm:$0xff]
    %v522 = vld [vmem:[#allocation6 + $0x468] sm:$0xff]
    %v523 = vld [vmem:[#allocation6 + $0x470] sm:$0xff]
    %v524 = vld [vmem:[#allocation6 + $0x478] sm:$0xff]
    %v525 = vld [vmem:[#allocation6 + $0x480] sm:$0xff]
    %v526 = vld [vmem:[#allocation6 + $0x488] sm:$0xff]
    %v527 = vld [vmem:[#allocation6 + $0x490] sm:$0xff]
    %v528 = vld [vmem:[#allocation6 + $0x498] sm:$0xff]
    %v529 = vld [vmem:[#allocation6 + $0x4a0] sm:$0xff]
    %v530 = vld [vmem:[#allocation6 + $0x4a8] sm:$0xff]
    %v531 = vld [vmem:[#allocation6 + $0x4b0] sm:$0xff]
    %v532 = vld [vmem:[#allocation6 + $0x4b8] sm:$0xff]
    %v533 = vld [vmem:[#allocation6 + $0x4c0] sm:$0xff]
    %v534 = vld [vmem:[#allocation6 + $0x4c8] sm:$0xff]
    %v535 = vld [vmem:[#allocation6 + $0x4d0] sm:$0xff]
    %v536 = vld [vmem:[#allocation6 + $0x4d8] sm:$0xff]
    %v537 = vld [vmem:[#allocation6 + $0x4e0] sm:$0xff]
    %v538 = vld [vmem:[#allocation6 + $0x4e8] sm:$0xff]
    %v539 = vld [vmem:[#allocation6 + $0x4f0] sm:$0xff]
    %v540 = vld [vmem:[#allocation6 + $0x4f8] sm:$0xff]
    %v541 = vld [vmem:[#allocation6 + $0x500] sm:$0xff]
    %v542 = vld [vmem:[#allocation6 + $0x508] sm:$0xff]
    %v543 = vld [vmem:[#allocation6 + $0x510] sm:$0xff]
    %v544 = vld [vmem:[#allocation6 + $0x518] sm:$0xff]
    %v545 = vld [vmem:[#allocation6 + $0x520] sm:$0xff]
    %v546 = vld [vmem:[#allocation6 + $0x528] sm:$0xff]
    %v547 = vld [vmem:[#allocation6 + $0x530] sm:$0xff]
    %v548 = vld [vmem:[#allocation6 + $0x538] sm:$0xff]
    %v549 = vld [vmem:[#allocation6 + $0x540] sm:$0xff]
    %v550 = vld [vmem:[#allocation6 + $0x548] sm:$0xff]
    %v551 = vld [vmem:[#allocation6 + $0x550] sm:$0xff]
    %v552 = vld [vmem:[#allocation6 + $0x558] sm:$0xff]
    %v553 = vld [vmem:[#allocation6 + $0x560] sm:$0xff]
    %v554 = vld [vmem:[#allocation6 + $0x568] sm:$0xff]
    %v555 = vld [vmem:[#allocation6 + $0x570] sm:$0xff]
    %v556 = vld [vmem:[#allocation6 + $0x578] sm:$0xff]
    %v557 = vld [vmem:[#allocation6 + $0x580] sm:$0xff]
    %v558 = vld [vmem:[#allocation6 + $0x588] sm:$0xff]
    %v559 = vld [vmem:[#allocation6 + $0x590] sm:$0xff]
    %v560 = vld [vmem:[#allocation6 + $0x598] sm:$0xff]
    %v561 = vld [vmem:[#allocation6 + $0x5a0] sm:$0xff]
    %v562 = vld [vmem:[#allocation6 + $0x5a8] sm:$0xff]
    %v563 = vld [vmem:[#allocation6 + $0x5b0] sm:$0xff]
    %v564 = vld [vmem:[#allocation6 + $0x5b8] sm:$0xff]
    %v565 = vld [vmem:[#allocation6 + $0x5c0] sm:$0xff]
    %v566 = vld [vmem:[#allocation6 + $0x5c8] sm:$0xff]
    %v567 = vld [vmem:[#allocation6 + $0x5d0] sm:$0xff]
    %v568 = vld [vmem:[#allocation6 + $0x5d8] sm:$0xff]
    %v569 = vld [vmem:[#allocation6 + $0x5e0] sm:$0xff]
    %v570 = vld [vmem:[#allocation6 + $0x5e8] sm:$0xff]
    %v571 = vld [vmem:[#allocation6 + $0x5f0] sm:$0xff]
    %v572 = vld [vmem:[#allocation6 + $0x5f8] sm:$0xff]
    %v573 = vld [vmem:[#allocation6 + $0x600] sm:$0xff]
    %v574 = vld [vmem:[#allocation6 + $0x608] sm:$0xff]
    %v575 = vld [vmem:[#allocation6 + $0x610] sm:$0xff]
    %v576 = vld [vmem:[#allocation6 + $0x618] sm:$0xff]
    %v577 = vld [vmem:[#allocation6 + $0x620] sm:$0xff]
    %v578 = vld [vmem:[#allocation6 + $0x628] sm:$0xff]
    %v579 = vld [vmem:[#allocation6 + $0x630] sm:$0xff]
    %v580 = vld [vmem:[#allocation6 + $0x638] sm:$0xff]
    %v581 = vld [vmem:[#allocation6 + $0x640] sm:$0xff]
    %v582 = vld [vmem:[#allocation6 + $0x648] sm:$0xff]
    %v583 = vld [vmem:[#allocation6 + $0x650] sm:$0xff]
    %v584 = vld [vmem:[#allocation6 + $0x658] sm:$0xff]
    %v585 = vld [vmem:[#allocation6 + $0x660] sm:$0xff]
    %v586 = vld [vmem:[#allocation6 + $0x668] sm:$0xff]
    %v587 = vld [vmem:[#allocation6 + $0x670] sm:$0xff]
    %v588 = vld [vmem:[#allocation6 + $0x678] sm:$0xff]
    %v589 = vld [vmem:[#allocation6 + $0x680] sm:$0xff]
    %v590 = vld [vmem:[#allocation6 + $0x688] sm:$0xff]
    %v591 = vld [vmem:[#allocation6 + $0x690] sm:$0xff]
    %v592 = vld [vmem:[#allocation6 + $0x698] sm:$0xff]
    %v593 = vld [vmem:[#allocation6 + $0x6a0] sm:$0xff]
    %v594 = vld [vmem:[#allocation6 + $0x6a8] sm:$0xff]
    %v595 = vld [vmem:[#allocation6 + $0x6b0] sm:$0xff]
    %v596 = vld [vmem:[#allocation6 + $0x6b8] sm:$0xff]
    %v597 = vld [vmem:[#allocation6 + $0x6c0] sm:$0xff]
    %v598 = vld [vmem:[#allocation6 + $0x6c8] sm:$0xff]
    %v599 = vld [vmem:[#allocation6 + $0x6d0] sm:$0xff]
    %v600 = vld [vmem:[#allocation6 + $0x6d8] sm:$0xff]
    %v601 = vld [vmem:[#allocation6 + $0x6e0] sm:$0xff]
    %v602 = vld [vmem:[#allocation6 + $0x6e8] sm:$0xff]
    %v603 = vld [vmem:[#allocation6 + $0x6f0] sm:$0xff]
    %v604 = vld [vmem:[#allocation6 + $0x6f8] sm:$0xff]
    %v605 = vld [vmem:[#allocation6 + $0x700] sm:$0xff]
    %v606 = vld [vmem:[#allocation6 + $0x708] sm:$0xff]
    %v607 = vld [vmem:[#allocation6 + $0x710] sm:$0xff]
    %v608 = vld [vmem:[#allocation6 + $0x718] sm:$0xff]
    %v609 = vld [vmem:[#allocation6 + $0x720] sm:$0xff]
    %v610 = vld [vmem:[#allocation6 + $0x728] sm:$0xff]
    %v611 = vld [vmem:[#allocation6 + $0x730] sm:$0xff]
    %v612 = vld [vmem:[#allocation6 + $0x738] sm:$0xff]
    %v613 = vld [vmem:[#allocation6 + $0x740] sm:$0xff]
    %v614 = vld [vmem:[#allocation6 + $0x748] sm:$0xff]
    %v615 = vld [vmem:[#allocation6 + $0x750] sm:$0xff]
    %v616 = vld [vmem:[#allocation6 + $0x758] sm:$0xff]
    %v617 = vld [vmem:[#allocation6 + $0x760] sm:$0xff]
    %v618 = vld [vmem:[#allocation6 + $0x768] sm:$0xff]
    %v619 = vld [vmem:[#allocation6 + $0x770] sm:$0xff]
    %v620 = vld [vmem:[#allocation6 + $0x778] sm:$0xff]
    %v621 = vld [vmem:[#allocation6 + $0x780] sm:$0xff]
    %v622 = vld [vmem:[#allocation6 + $0x788] sm:$0xff]
    %v623 = vld [vmem:[#allocation6 + $0x790] sm:$0xff]
    %v624 = vld [vmem:[#allocation6 + $0x798] sm:$0xff]
    %v625 = vld [vmem:[#allocation6 + $0x7a0] sm:$0xff]
    %v626 = vld [vmem:[#allocation6 + $0x7a8] sm:$0xff]
    %v627 = vld [vmem:[#allocation6 + $0x7b0] sm:$0xff]
    %v628 = vld [vmem:[#allocation6 + $0x7b8] sm:$0xff]
    %v629 = vld [vmem:[#allocation6 + $0x7c0] sm:$0xff]
    %v630 = vld [vmem:[#allocation6 + $0x7c8] sm:$0xff]
    %v631 = vld [vmem:[#allocation6 + $0x7d0] sm:$0xff]
    %v632 = vld [vmem:[#allocation6 + $0x7d8] sm:$0xff]
    %v633 = vld [vmem:[#allocation6 + $0x7e0] sm:$0xff]
    %v634 = vld [vmem:[#allocation6 + $0x7e8] sm:$0xff]
    %v635 = vld [vmem:[#allocation6 + $0x7f0] sm:$0xff]
    %v636 = vld [vmem:[#allocation6 + $0x7f8] sm:$0xff]
    %v637 = vld [vmem:[%s5] sm:$0xf]
    %v639 = vperm.slane %v637, 0
    %v640 = vperm.slane %v637, 1
    %v641 = vperm.slane %v637, 2
    %v642 = vperm.slane %v637, 3
    %v903 = vunpack.c.l.b16 %v381
    %v904 = vunpack.c.h.b16 %v381
    %v905 = vunpack.c.l.b16 %v382
    %v906 = vunpack.c.h.b16 %v382
    %v907 = vunpack.c.l.b16 %v383
    %v908 = vunpack.c.h.b16 %v383
    %v909 = vunpack.c.l.b16 %v384
    %v910 = vunpack.c.h.b16 %v384
    %v911 = vunpack.c.l.b16 %v385
    %v912 = vunpack.c.h.b16 %v385
    %v913 = vunpack.c.l.b16 %v386
    %v914 = vunpack.c.h.b16 %v386
    %v915 = vunpack.c.l.b16 %v387
    %v916 = vunpack.c.h.b16 %v387
    %v917 = vunpack.c.l.b16 %v388
    %v918 = vunpack.c.h.b16 %v388
    %v919 = vunpack.c.l.b16 %v389
    %v920 = vunpack.c.h.b16 %v389
    %v921 = vunpack.c.l.b16 %v390
    %v922 = vunpack.c.h.b16 %v390
    %v923 = vunpack.c.l.b16 %v391
    %v924 = vunpack.c.h.b16 %v391
    %v925 = vunpack.c.l.b16 %v392
    %v926 = vunpack.c.h.b16 %v392
    %v927 = vunpack.c.l.b16 %v393
    %v928 = vunpack.c.h.b16 %v393
    %v929 = vunpack.c.l.b16 %v394
    %v930 = vunpack.c.h.b16 %v394
    %v931 = vunpack.c.l.b16 %v395
    %v932 = vunpack.c.h.b16 %v395
    %v933 = vunpack.c.l.b16 %v396
    %v934 = vunpack.c.h.b16 %v396
    %v935 = vunpack.c.l.b16 %v397
    %v936 = vunpack.c.h.b16 %v397
    %v937 = vunpack.c.l.b16 %v398
    %v938 = vunpack.c.h.b16 %v398
    %v939 = vunpack.c.l.b16 %v399
    %v940 = vunpack.c.h.b16 %v399
    %v941 = vunpack.c.l.b16 %v400
    %v942 = vunpack.c.h.b16 %v400
    %v943 = vunpack.c.l.b16 %v401
    %v944 = vunpack.c.h.b16 %v401
    %v945 = vunpack.c.l.b16 %v402
    %v946 = vunpack.c.h.b16 %v402
    %v947 = vunpack.c.l.b16 %v403
    %v948 = vunpack.c.h.b16 %v403
    %v949 = vunpack.c.l.b16 %v404
    %v950 = vunpack.c.h.b16 %v404
    %v951 = vunpack.c.l.b16 %v405
    %v952 = vunpack.c.h.b16 %v405
    %v953 = vunpack.c.l.b16 %v406
    %v954 = vunpack.c.h.b16 %v406
    %v955 = vunpack.c.l.b16 %v407
    %v956 = vunpack.c.h.b16 %v407
    %v957 = vunpack.c.l.b16 %v408
    %v958 = vunpack.c.h.b16 %v408
    %v959 = vunpack.c.l.b16 %v409
    %v960 = vunpack.c.h.b16 %v409
    %v961 = vunpack.c.l.b16 %v410
    %v962 = vunpack.c.h.b16 %v410
    %v963 = vunpack.c.l.b16 %v411
    %v964 = vunpack.c.h.b16 %v411
    %v965 = vunpack.c.l.b16 %v412
    %v966 = vunpack.c.h.b16 %v412
    %v967 = vunpack.c.l.b16 %v413
    %v968 = vunpack.c.h.b16 %v413
    %v969 = vunpack.c.l.b16 %v414
    %v970 = vunpack.c.h.b16 %v414
    %v971 = vunpack.c.l.b16 %v415
    %v972 = vunpack.c.h.b16 %v415
    %v973 = vunpack.c.l.b16 %v416
    %v974 = vunpack.c.h.b16 %v416
    %v975 = vunpack.c.l.b16 %v417
    %v976 = vunpack.c.h.b16 %v417
    %v977 = vunpack.c.l.b16 %v418
    %v978 = vunpack.c.h.b16 %v418
    %v979 = vunpack.c.l.b16 %v419
    %v980 = vunpack.c.h.b16 %v419
    %v981 = vunpack.c.l.b16 %v420
    %v982 = vunpack.c.h.b16 %v420
    %v983 = vunpack.c.l.b16 %v421
    %v984 = vunpack.c.h.b16 %v421
    %v985 = vunpack.c.l.b16 %v422
    %v986 = vunpack.c.h.b16 %v422
    %v987 = vunpack.c.l.b16 %v423
    %v988 = vunpack.c.h.b16 %v423
    %v989 = vunpack.c.l.b16 %v424
    %v990 = vunpack.c.h.b16 %v424
    %v991 = vunpack.c.l.b16 %v425
    %v992 = vunpack.c.h.b16 %v425
    %v993 = vunpack.c.l.b16 %v426
    %v994 = vunpack.c.h.b16 %v426
    %v995 = vunpack.c.l.b16 %v427
    %v996 = vunpack.c.h.b16 %v427
    %v997 = vunpack.c.l.b16 %v428
    %v998 = vunpack.c.h.b16 %v428
    %v999 = vunpack.c.l.b16 %v429
    %v1000 = vunpack.c.h.b16 %v429
    %v1001 = vunpack.c.l.b16 %v430
    %v1002 = vunpack.c.h.b16 %v430
    %v1003 = vunpack.c.l.b16 %v431
    %v1004 = vunpack.c.h.b16 %v431
    %v1005 = vunpack.c.l.b16 %v432
    %v1006 = vunpack.c.h.b16 %v432
    %v1007 = vunpack.c.l.b16 %v433
    %v1008 = vunpack.c.h.b16 %v433
    %v1009 = vunpack.c.l.b16 %v434
    %v1010 = vunpack.c.h.b16 %v434
    %v1011 = vunpack.c.l.b16 %v435
    %v1012 = vunpack.c.h.b16 %v435
    %v1013 = vunpack.c.l.b16 %v436
    %v1014 = vunpack.c.h.b16 %v436
    %v1015 = vunpack.c.l.b16 %v437
    %v1016 = vunpack.c.h.b16 %v437
    %v1017 = vunpack.c.l.b16 %v438
    %v1018 = vunpack.c.h.b16 %v438
    %v1019 = vunpack.c.l.b16 %v439
    %v1020 = vunpack.c.h.b16 %v439
    %v1021 = vunpack.c.l.b16 %v440
    %v1022 = vunpack.c.h.b16 %v440
    %v1023 = vunpack.c.l.b16 %v441
    %v1024 = vunpack.c.h.b16 %v441
    %v1025 = vunpack.c.l.b16 %v442
    %v1026 = vunpack.c.h.b16 %v442
    %v1027 = vunpack.c.l.b16 %v443
    %v1028 = vunpack.c.h.b16 %v443
    %v1029 = vunpack.c.l.b16 %v444
    %v1030 = vunpack.c.h.b16 %v444
    %v1031 = vunpack.c.l.b16 %v445
    %v1032 = vunpack.c.h.b16 %v445
    %v1033 = vunpack.c.l.b16 %v446
    %v1034 = vunpack.c.h.b16 %v446
    %v1035 = vunpack.c.l.b16 %v447
    %v1036 = vunpack.c.h.b16 %v447
    %v1037 = vunpack.c.l.b16 %v448
    %v1038 = vunpack.c.h.b16 %v448
    %v1039 = vunpack.c.l.b16 %v449
    %v1040 = vunpack.c.h.b16 %v449
    %v1041 = vunpack.c.l.b16 %v450
    %v1042 = vunpack.c.h.b16 %v450
    %v1043 = vunpack.c.l.b16 %v451
    %v1044 = vunpack.c.h.b16 %v451
    %v1045 = vunpack.c.l.b16 %v452
    %v1046 = vunpack.c.h.b16 %v452
    %v1047 = vunpack.c.l.b16 %v453
    %v1048 = vunpack.c.h.b16 %v453
    %v1049 = vunpack.c.l.b16 %v454
    %v1050 = vunpack.c.h.b16 %v454
    %v1051 = vunpack.c.l.b16 %v455
    %v1052 = vunpack.c.h.b16 %v455
    %v1053 = vunpack.c.l.b16 %v456
    %v1054 = vunpack.c.h.b16 %v456
    %v1055 = vunpack.c.l.b16 %v457
    %v1056 = vunpack.c.h.b16 %v457
    %v1057 = vunpack.c.l.b16 %v458
    %v1058 = vunpack.c.h.b16 %v458
    %v1059 = vunpack.c.l.b16 %v459
    %v1060 = vunpack.c.h.b16 %v459
    %v1061 = vunpack.c.l.b16 %v460
    %v1062 = vunpack.c.h.b16 %v460
    %v1063 = vunpack.c.l.b16 %v461
    %v1064 = vunpack.c.h.b16 %v461
    %v1065 = vunpack.c.l.b16 %v462
    %v1066 = vunpack.c.h.b16 %v462
    %v1067 = vunpack.c.l.b16 %v463
    %v1068 = vunpack.c.h.b16 %v463
    %v1069 = vunpack.c.l.b16 %v464
    %v1070 = vunpack.c.h.b16 %v464
    %v1071 = vunpack.c.l.b16 %v465
    %v1072 = vunpack.c.h.b16 %v465
    %v1073 = vunpack.c.l.b16 %v466
    %v1074 = vunpack.c.h.b16 %v466
    %v1075 = vunpack.c.l.b16 %v467
    %v1076 = vunpack.c.h.b16 %v467
    %v1077 = vunpack.c.l.b16 %v468
    %v1078 = vunpack.c.h.b16 %v468
    %v1079 = vunpack.c.l.b16 %v469
    %v1080 = vunpack.c.h.b16 %v469
    %v1081 = vunpack.c.l.b16 %v470
    %v1082 = vunpack.c.h.b16 %v470
    %v1083 = vunpack.c.l.b16 %v471
    %v1084 = vunpack.c.h.b16 %v471
    %v1085 = vunpack.c.l.b16 %v472
    %v1086 = vunpack.c.h.b16 %v472
    %v1087 = vunpack.c.l.b16 %v473
    %v1088 = vunpack.c.h.b16 %v473
    %v1089 = vunpack.c.l.b16 %v474
    %v1090 = vunpack.c.h.b16 %v474
    %v1091 = vunpack.c.l.b16 %v475
    %v1092 = vunpack.c.h.b16 %v475
    %v1093 = vunpack.c.l.b16 %v476
    %v1094 = vunpack.c.h.b16 %v476
    %v1095 = vunpack.c.l.b16 %v477
    %v1096 = vunpack.c.h.b16 %v477
    %v1097 = vunpack.c.l.b16 %v478
    %v1098 = vunpack.c.h.b16 %v478
    %v1099 = vunpack.c.l.b16 %v479
    %v1100 = vunpack.c.h.b16 %v479
    %v1101 = vunpack.c.l.b16 %v480
    %v1102 = vunpack.c.h.b16 %v480
    %v1103 = vunpack.c.l.b16 %v481
    %v1104 = vunpack.c.h.b16 %v481
    %v1105 = vunpack.c.l.b16 %v482
    %v1106 = vunpack.c.h.b16 %v482
    %v1107 = vunpack.c.l.b16 %v483
    %v1108 = vunpack.c.h.b16 %v483
    %v1109 = vunpack.c.l.b16 %v484
    %v1110 = vunpack.c.h.b16 %v484
    %v1111 = vunpack.c.l.b16 %v485
    %v1112 = vunpack.c.h.b16 %v485
    %v1113 = vunpack.c.l.b16 %v486
    %v1114 = vunpack.c.h.b16 %v486
    %v1115 = vunpack.c.l.b16 %v487
    %v1116 = vunpack.c.h.b16 %v487
    %v1117 = vunpack.c.l.b16 %v488
    %v1118 = vunpack.c.h.b16 %v488
    %v1119 = vunpack.c.l.b16 %v489
    %v1120 = vunpack.c.h.b16 %v489
    %v1121 = vunpack.c.l.b16 %v490
    %v1122 = vunpack.c.h.b16 %v490
    %v1123 = vunpack.c.l.b16 %v491
    %v1124 = vunpack.c.h.b16 %v491
    %v1125 = vunpack.c.l.b16 %v492
    %v1126 = vunpack.c.h.b16 %v492
    %v1127 = vunpack.c.l.b16 %v493
    %v1128 = vunpack.c.h.b16 %v493
    %v1129 = vunpack.c.l.b16 %v494
    %v1130 = vunpack.c.h.b16 %v494
    %v1131 = vunpack.c.l.b16 %v495
    %v1132 = vunpack.c.h.b16 %v495
    %v1133 = vunpack.c.l.b16 %v496
    %v1134 = vunpack.c.h.b16 %v496
    %v1135 = vunpack.c.l.b16 %v497
    %v1136 = vunpack.c.h.b16 %v497
    %v1137 = vunpack.c.l.b16 %v498
    %v1138 = vunpack.c.h.b16 %v498
    %v1139 = vunpack.c.l.b16 %v499
    %v1140 = vunpack.c.h.b16 %v499
    %v1141 = vunpack.c.l.b16 %v500
    %v1142 = vunpack.c.h.b16 %v500
    %v1143 = vunpack.c.l.b16 %v501
    %v1144 = vunpack.c.h.b16 %v501
    %v1145 = vunpack.c.l.b16 %v502
    %v1146 = vunpack.c.h.b16 %v502
    %v1147 = vunpack.c.l.b16 %v503
    %v1148 = vunpack.c.h.b16 %v503
    %v1149 = vunpack.c.l.b16 %v504
    %v1150 = vunpack.c.h.b16 %v504
    %v1151 = vunpack.c.l.b16 %v505
    %v1152 = vunpack.c.h.b16 %v505
    %v1153 = vunpack.c.l.b16 %v506
    %v1154 = vunpack.c.h.b16 %v506
    %v1155 = vunpack.c.l.b16 %v507
    %v1156 = vunpack.c.h.b16 %v507
    %v1157 = vunpack.c.l.b16 %v508
    %v1158 = vunpack.c.h.b16 %v508
    %v1159 = vunpack.c.l.b16 %v509
    %v1160 = vunpack.c.h.b16 %v509
    %v1161 = vunpack.c.l.b16 %v510
    %v1162 = vunpack.c.h.b16 %v510
    %v1163 = vunpack.c.l.b16 %v511
    %v1164 = vunpack.c.h.b16 %v511
    %v1165 = vunpack.c.l.b16 %v512
    %v1166 = vunpack.c.h.b16 %v512
    %v1167 = vunpack.c.l.b16 %v513
    %v1168 = vunpack.c.h.b16 %v513
    %v1169 = vunpack.c.l.b16 %v514
    %v1170 = vunpack.c.h.b16 %v514
    %v1171 = vunpack.c.l.b16 %v515
    %v1172 = vunpack.c.h.b16 %v515
    %v1173 = vunpack.c.l.b16 %v516
    %v1174 = vunpack.c.h.b16 %v516
    %v1175 = vunpack.c.l.b16 %v517
    %v1176 = vunpack.c.h.b16 %v517
    %v1177 = vunpack.c.l.b16 %v518
    %v1178 = vunpack.c.h.b16 %v518
    %v1179 = vunpack.c.l.b16 %v519
    %v1180 = vunpack.c.h.b16 %v519
    %v1181 = vunpack.c.l.b16 %v520
    %v1182 = vunpack.c.h.b16 %v520
    %v1183 = vunpack.c.l.b16 %v521
    %v1184 = vunpack.c.h.b16 %v521
    %v1185 = vunpack.c.l.b16 %v522
    %v1186 = vunpack.c.h.b16 %v522
    %v1187 = vunpack.c.l.b16 %v523
    %v1188 = vunpack.c.h.b16 %v523
    %v1189 = vunpack.c.l.b16 %v524
    %v1190 = vunpack.c.h.b16 %v524
    %v1191 = vunpack.c.l.b16 %v525
    %v1192 = vunpack.c.h.b16 %v525
    %v1193 = vunpack.c.l.b16 %v526
    %v1194 = vunpack.c.h.b16 %v526
    %v1195 = vunpack.c.l.b16 %v527
    %v1196 = vunpack.c.h.b16 %v527
    %v1197 = vunpack.c.l.b16 %v528
    %v1198 = vunpack.c.h.b16 %v528
    %v1199 = vunpack.c.l.b16 %v529
    %v1200 = vunpack.c.h.b16 %v529
    %v1201 = vunpack.c.l.b16 %v530
    %v1202 = vunpack.c.h.b16 %v530
    %v1203 = vunpack.c.l.b16 %v531
    %v1204 = vunpack.c.h.b16 %v531
    %v1205 = vunpack.c.l.b16 %v532
    %v1206 = vunpack.c.h.b16 %v532
    %v1207 = vunpack.c.l.b16 %v533
    %v1208 = vunpack.c.h.b16 %v533
    %v1209 = vunpack.c.l.b16 %v534
    %v1210 = vunpack.c.h.b16 %v534
    %v1211 = vunpack.c.l.b16 %v535
    %v1212 = vunpack.c.h.b16 %v535
    %v1213 = vunpack.c.l.b16 %v536
    %v1214 = vunpack.c.h.b16 %v536
    %v1215 = vunpack.c.l.b16 %v537
    %v1216 = vunpack.c.h.b16 %v537
    %v1217 = vunpack.c.l.b16 %v538
    %v1218 = vunpack.c.h.b16 %v538
    %v1219 = vunpack.c.l.b16 %v539
    %v1220 = vunpack.c.h.b16 %v539
    %v1221 = vunpack.c.l.b16 %v540
    %v1222 = vunpack.c.h.b16 %v540
    %v1223 = vunpack.c.l.b16 %v541
    %v1224 = vunpack.c.h.b16 %v541
    %v1225 = vunpack.c.l.b16 %v542
    %v1226 = vunpack.c.h.b16 %v542
    %v1227 = vunpack.c.l.b16 %v543
    %v1228 = vunpack.c.h.b16 %v543
    %v1229 = vunpack.c.l.b16 %v544
    %v1230 = vunpack.c.h.b16 %v544
    %v1231 = vunpack.c.l.b16 %v545
    %v1232 = vunpack.c.h.b16 %v545
    %v1233 = vunpack.c.l.b16 %v546
    %v1234 = vunpack.c.h.b16 %v546
    %v1235 = vunpack.c.l.b16 %v547
    %v1236 = vunpack.c.h.b16 %v547
    %v1237 = vunpack.c.l.b16 %v548
    %v1238 = vunpack.c.h.b16 %v548
    %v1239 = vunpack.c.l.b16 %v549
    %v1240 = vunpack.c.h.b16 %v549
    %v1241 = vunpack.c.l.b16 %v550
    %v1242 = vunpack.c.h.b16 %v550
    %v1243 = vunpack.c.l.b16 %v551
    %v1244 = vunpack.c.h.b16 %v551
    %v1245 = vunpack.c.l.b16 %v552
    %v1246 = vunpack.c.h.b16 %v552
    %v1247 = vunpack.c.l.b16 %v553
    %v1248 = vunpack.c.h.b16 %v553
    %v1249 = vunpack.c.l.b16 %v554
    %v1250 = vunpack.c.h.b16 %v554
    %v1251 = vunpack.c.l.b16 %v555
    %v1252 = vunpack.c.h.b16 %v555
    %v1253 = vunpack.c.l.b16 %v556
    %v1254 = vunpack.c.h.b16 %v556
    %v1255 = vunpack.c.l.b16 %v557
    %v1256 = vunpack.c.h.b16 %v557
    %v1257 = vunpack.c.l.b16 %v558
    %v1258 = vunpack.c.h.b16 %v558
    %v1259 = vunpack.c.l.b16 %v559
    %v1260 = vunpack.c.h.b16 %v559
    %v1261 = vunpack.c.l.b16 %v560
    %v1262 = vunpack.c.h.b16 %v560
    %v1263 = vunpack.c.l.b16 %v561
    %v1264 = vunpack.c.h.b16 %v561
    %v1265 = vunpack.c.l.b16 %v562
    %v1266 = vunpack.c.h.b16 %v562
    %v1267 = vunpack.c.l.b16 %v563
    %v1268 = vunpack.c.h.b16 %v563
    %v1269 = vunpack.c.l.b16 %v564
    %v1270 = vunpack.c.h.b16 %v564
    %v1271 = vunpack.c.l.b16 %v565
    %v1272 = vunpack.c.h.b16 %v565
    %v1273 = vunpack.c.l.b16 %v566
    %v1274 = vunpack.c.h.b16 %v566
    %v1275 = vunpack.c.l.b16 %v567
    %v1276 = vunpack.c.h.b16 %v567
    %v1277 = vunpack.c.l.b16 %v568
    %v1278 = vunpack.c.h.b16 %v568
    %v1279 = vunpack.c.l.b16 %v569
    %v1280 = vunpack.c.h.b16 %v569
    %v1281 = vunpack.c.l.b16 %v570
    %v1282 = vunpack.c.h.b16 %v570
    %v1283 = vunpack.c.l.b16 %v571
    %v1284 = vunpack.c.h.b16 %v571
    %v1285 = vunpack.c.l.b16 %v572
    %v1286 = vunpack.c.h.b16 %v572
    %v1287 = vunpack.c.l.b16 %v573
    %v1288 = vunpack.c.h.b16 %v573
    %v1289 = vunpack.c.l.b16 %v574
    %v1290 = vunpack.c.h.b16 %v574
    %v1291 = vunpack.c.l.b16 %v575
    %v1292 = vunpack.c.h.b16 %v575
    %v1293 = vunpack.c.l.b16 %v576
    %v1294 = vunpack.c.h.b16 %v576
    %v1295 = vunpack.c.l.b16 %v577
    %v1296 = vunpack.c.h.b16 %v577
    %v1297 = vunpack.c.l.b16 %v578
    %v1298 = vunpack.c.h.b16 %v578
    %v1299 = vunpack.c.l.b16 %v579
    %v1300 = vunpack.c.h.b16 %v579
    %v1301 = vunpack.c.l.b16 %v580
    %v1302 = vunpack.c.h.b16 %v580
    %v1303 = vunpack.c.l.b16 %v581
    %v1304 = vunpack.c.h.b16 %v581
    %v1305 = vunpack.c.l.b16 %v582
    %v1306 = vunpack.c.h.b16 %v582
    %v1307 = vunpack.c.l.b16 %v583
    %v1308 = vunpack.c.h.b16 %v583
    %v1309 = vunpack.c.l.b16 %v584
    %v1310 = vunpack.c.h.b16 %v584
    %v1311 = vunpack.c.l.b16 %v585
    %v1312 = vunpack.c.h.b16 %v585
    %v1313 = vunpack.c.l.b16 %v586
    %v1314 = vunpack.c.h.b16 %v586
    %v1315 = vunpack.c.l.b16 %v587
    %v1316 = vunpack.c.h.b16 %v587
    %v1317 = vunpack.c.l.b16 %v588
    %v1318 = vunpack.c.h.b16 %v588
    %v1319 = vunpack.c.l.b16 %v589
    %v1320 = vunpack.c.h.b16 %v589
    %v1321 = vunpack.c.l.b16 %v590
    %v1322 = vunpack.c.h.b16 %v590
    %v1323 = vunpack.c.l.b16 %v591
    %v1324 = vunpack.c.h.b16 %v591
    %v1325 = vunpack.c.l.b16 %v592
    %v1326 = vunpack.c.h.b16 %v592
    %v1327 = vunpack.c.l.b16 %v593
    %v1328 = vunpack.c.h.b16 %v593
    %v1329 = vunpack.c.l.b16 %v594
    %v1330 = vunpack.c.h.b16 %v594
    %v1331 = vunpack.c.l.b16 %v595
    %v1332 = vunpack.c.h.b16 %v595
    %v1333 = vunpack.c.l.b16 %v596
    %v1334 = vunpack.c.h.b16 %v596
    %v1335 = vunpack.c.l.b16 %v597
    %v1336 = vunpack.c.h.b16 %v597
    %v1337 = vunpack.c.l.b16 %v598
    %v1338 = vunpack.c.h.b16 %v598
    %v1339 = vunpack.c.l.b16 %v599
    %v1340 = vunpack.c.h.b16 %v599
    %v1341 = vunpack.c.l.b16 %v600
    %v1342 = vunpack.c.h.b16 %v600
    %v1343 = vunpack.c.l.b16 %v601
    %v1344 = vunpack.c.h.b16 %v601
    %v1345 = vunpack.c.l.b16 %v602
    %v1346 = vunpack.c.h.b16 %v602
    %v1347 = vunpack.c.l.b16 %v603
    %v1348 = vunpack.c.h.b16 %v603
    %v1349 = vunpack.c.l.b16 %v604
    %v1350 = vunpack.c.h.b16 %v604
    %v1351 = vunpack.c.l.b16 %v605
    %v1352 = vunpack.c.h.b16 %v605
    %v1353 = vunpack.c.l.b16 %v606
    %v1354 = vunpack.c.h.b16 %v606
    %v1355 = vunpack.c.l.b16 %v607
    %v1356 = vunpack.c.h.b16 %v607
    %v1357 = vunpack.c.l.b16 %v608
    %v1358 = vunpack.c.h.b16 %v608
    %v1359 = vunpack.c.l.b16 %v609
    %v1360 = vunpack.c.h.b16 %v609
    %v1361 = vunpack.c.l.b16 %v610
    %v1362 = vunpack.c.h.b16 %v610
    %v1363 = vunpack.c.l.b16 %v611
    %v1364 = vunpack.c.h.b16 %v611
    %v1365 = vunpack.c.l.b16 %v612
    %v1366 = vunpack.c.h.b16 %v612
    %v1367 = vunpack.c.l.b16 %v613
    %v1368 = vunpack.c.h.b16 %v613
    %v1369 = vunpack.c.l.b16 %v614
    %v1370 = vunpack.c.h.b16 %v614
    %v1371 = vunpack.c.l.b16 %v615
    %v1372 = vunpack.c.h.b16 %v615
    %v1373 = vunpack.c.l.b16 %v616
    %v1374 = vunpack.c.h.b16 %v616
    %v1375 = vunpack.c.l.b16 %v617
    %v1376 = vunpack.c.h.b16 %v617
    %v1377 = vunpack.c.l.b16 %v618
    %v1378 = vunpack.c.h.b16 %v618
    %v1379 = vunpack.c.l.b16 %v619
    %v1380 = vunpack.c.h.b16 %v619
    %v1381 = vunpack.c.l.b16 %v620
    %v1382 = vunpack.c.h.b16 %v620
    %v1383 = vunpack.c.l.b16 %v621
    %v1384 = vunpack.c.h.b16 %v621
    %v1385 = vunpack.c.l.b16 %v622
    %v1386 = vunpack.c.h.b16 %v622
    %v1387 = vunpack.c.l.b16 %v623
    %v1388 = vunpack.c.h.b16 %v623
    %v1389 = vunpack.c.l.b16 %v624
    %v1390 = vunpack.c.h.b16 %v624
    %v1391 = vunpack.c.l.b16 %v625
    %v1392 = vunpack.c.h.b16 %v625
    %v1393 = vunpack.c.l.b16 %v626
    %v1394 = vunpack.c.h.b16 %v626
    %v1395 = vunpack.c.l.b16 %v627
    %v1396 = vunpack.c.h.b16 %v627
    %v1397 = vunpack.c.l.b16 %v628
    %v1398 = vunpack.c.h.b16 %v628
    %v1399 = vunpack.c.l.b16 %v629
    %v1400 = vunpack.c.h.b16 %v629
    %v1401 = vunpack.c.l.b16 %v630
    %v1402 = vunpack.c.h.b16 %v630
    %v1403 = vunpack.c.l.b16 %v631
    %v1404 = vunpack.c.h.b16 %v631
    %v1405 = vunpack.c.l.b16 %v632
    %v1406 = vunpack.c.h.b16 %v632
    %v1407 = vunpack.c.l.b16 %v633
    %v1408 = vunpack.c.h.b16 %v633
    %v1409 = vunpack.c.l.b16 %v634
    %v1410 = vunpack.c.h.b16 %v634
    %v1411 = vunpack.c.l.b16 %v635
    %v1412 = vunpack.c.h.b16 %v635
    %v1413 = vunpack.c.l.b16 %v636
    %v1414 = vunpack.c.h.b16 %v636
    %v1415 = vpack.c.b16 %v907, %v903
    %v1416 = vpack.c.b16 %v908, %v904
    %v1417 = vpack.c.b16 %v909, %v905
    %v1418 = vpack.c.b16 %v910, %v906
    %v1419 = vpack.c.b16 %v915, %v911
    %v1420 = vpack.c.b16 %v916, %v912
    %v1421 = vpack.c.b16 %v917, %v913
    %v1422 = vpack.c.b16 %v918, %v914
    %v1423 = vpack.c.b16 %v923, %v919
    %v1424 = vpack.c.b16 %v924, %v920
    %v1425 = vpack.c.b16 %v925, %v921
    %v1426 = vpack.c.b16 %v926, %v922
    %v1427 = vpack.c.b16 %v931, %v927
    %v1428 = vpack.c.b16 %v932, %v928
    %v1429 = vpack.c.b16 %v933, %v929
    %v1430 = vpack.c.b16 %v934, %v930
    %v1431 = vpack.c.b16 %v939, %v935
    %v1432 = vpack.c.b16 %v940, %v936
    %v1433 = vpack.c.b16 %v941, %v937
    %v1434 = vpack.c.b16 %v942, %v938
    %v1435 = vpack.c.b16 %v947, %v943
    %v1436 = vpack.c.b16 %v948, %v944
    %v1437 = vpack.c.b16 %v949, %v945
    %v1438 = vpack.c.b16 %v950, %v946
    %v1439 = vpack.c.b16 %v955, %v951
    %v1440 = vpack.c.b16 %v956, %v952
    %v1441 = vpack.c.b16 %v957, %v953
    %v1442 = vpack.c.b16 %v958, %v954
    %v1443 = vpack.c.b16 %v963, %v959
    %v1444 = vpack.c.b16 %v964, %v960
    %v1445 = vpack.c.b16 %v965, %v961
    %v1446 = vpack.c.b16 %v966, %v962
    %v1447 = vpack.c.b16 %v971, %v967
    %v1448 = vpack.c.b16 %v972, %v968
    %v1449 = vpack.c.b16 %v973, %v969
    %v1450 = vpack.c.b16 %v974, %v970
    %v1451 = vpack.c.b16 %v979, %v975
    %v1452 = vpack.c.b16 %v980, %v976
    %v1453 = vpack.c.b16 %v981, %v977
    %v1454 = vpack.c.b16 %v982, %v978
    %v1455 = vpack.c.b16 %v987, %v983
    %v1456 = vpack.c.b16 %v988, %v984
    %v1457 = vpack.c.b16 %v989, %v985
    %v1458 = vpack.c.b16 %v990, %v986
    %v1459 = vpack.c.b16 %v995, %v991
    %v1460 = vpack.c.b16 %v996, %v992
    %v1461 = vpack.c.b16 %v997, %v993
    %v1462 = vpack.c.b16 %v998, %v994
    %v1463 = vpack.c.b16 %v1003, %v999
    %v1464 = vpack.c.b16 %v1004, %v1000
    %v1465 = vpack.c.b16 %v1005, %v1001
    %v1466 = vpack.c.b16 %v1006, %v1002
    %v1467 = vpack.c.b16 %v1011, %v1007
    %v1468 = vpack.c.b16 %v1012, %v1008
    %v1469 = vpack.c.b16 %v1013, %v1009
    %v1470 = vpack.c.b16 %v1014, %v1010
    %v1471 = vpack.c.b16 %v1019, %v1015
    %v1472 = vpack.c.b16 %v1020, %v1016
    %v1473 = vpack.c.b16 %v1021, %v1017
    %v1474 = vpack.c.b16 %v1022, %v1018
    %v1475 = vpack.c.b16 %v1027, %v1023
    %v1476 = vpack.c.b16 %v1028, %v1024
    %v1477 = vpack.c.b16 %v1029, %v1025
    %v1478 = vpack.c.b16 %v1030, %v1026
    %v1479 = vpack.c.b16 %v1035, %v1031
    %v1480 = vpack.c.b16 %v1036, %v1032
    %v1481 = vpack.c.b16 %v1037, %v1033
    %v1482 = vpack.c.b16 %v1038, %v1034
    %v1483 = vpack.c.b16 %v1043, %v1039
    %v1484 = vpack.c.b16 %v1044, %v1040
    %v1485 = vpack.c.b16 %v1045, %v1041
    %v1486 = vpack.c.b16 %v1046, %v1042
    %v1487 = vpack.c.b16 %v1051, %v1047
    %v1488 = vpack.c.b16 %v1052, %v1048
    %v1489 = vpack.c.b16 %v1053, %v1049
    %v1490 = vpack.c.b16 %v1054, %v1050
    %v1491 = vpack.c.b16 %v1059, %v1055
    %v1492 = vpack.c.b16 %v1060, %v1056
    %v1493 = vpack.c.b16 %v1061, %v1057
    %v1494 = vpack.c.b16 %v1062, %v1058
    %v1495 = vpack.c.b16 %v1067, %v1063
    %v1496 = vpack.c.b16 %v1068, %v1064
    %v1497 = vpack.c.b16 %v1069, %v1065
    %v1498 = vpack.c.b16 %v1070, %v1066
    %v1499 = vpack.c.b16 %v1075, %v1071
    %v1500 = vpack.c.b16 %v1076, %v1072
    %v1501 = vpack.c.b16 %v1077, %v1073
    %v1502 = vpack.c.b16 %v1078, %v1074
    %v1503 = vpack.c.b16 %v1083, %v1079
    %v1504 = vpack.c.b16 %v1084, %v1080
    %v1505 = vpack.c.b16 %v1085, %v1081
    %v1506 = vpack.c.b16 %v1086, %v1082
    %v1507 = vpack.c.b16 %v1091, %v1087
    %v1508 = vpack.c.b16 %v1092, %v1088
    %v1509 = vpack.c.b16 %v1093, %v1089
    %v1510 = vpack.c.b16 %v1094, %v1090
    %v1511 = vpack.c.b16 %v1099, %v1095
    %v1512 = vpack.c.b16 %v1100, %v1096
    %v1513 = vpack.c.b16 %v1101, %v1097
    %v1514 = vpack.c.b16 %v1102, %v1098
    %v1515 = vpack.c.b16 %v1107, %v1103
    %v1516 = vpack.c.b16 %v1108, %v1104
    %v1517 = vpack.c.b16 %v1109, %v1105
    %v1518 = vpack.c.b16 %v1110, %v1106
    %v1519 = vpack.c.b16 %v1115, %v1111
    %v1520 = vpack.c.b16 %v1116, %v1112
    %v1521 = vpack.c.b16 %v1117, %v1113
    %v1522 = vpack.c.b16 %v1118, %v1114
    %v1523 = vpack.c.b16 %v1123, %v1119
    %v1524 = vpack.c.b16 %v1124, %v1120
    %v1525 = vpack.c.b16 %v1125, %v1121
    %v1526 = vpack.c.b16 %v1126, %v1122
    %v1527 = vpack.c.b16 %v1131, %v1127
    %v1528 = vpack.c.b16 %v1132, %v1128
    %v1529 = vpack.c.b16 %v1133, %v1129
    %v1530 = vpack.c.b16 %v1134, %v1130
    %v1531 = vpack.c.b16 %v1139, %v1135
    %v1532 = vpack.c.b16 %v1140, %v1136
    %v1533 = vpack.c.b16 %v1141, %v1137
    %v1534 = vpack.c.b16 %v1142, %v1138
    %v1535 = vpack.c.b16 %v1147, %v1143
    %v1536 = vpack.c.b16 %v1148, %v1144
    %v1537 = vpack.c.b16 %v1149, %v1145
    %v1538 = vpack.c.b16 %v1150, %v1146
    %v1539 = vpack.c.b16 %v1155, %v1151
    %v1540 = vpack.c.b16 %v1156, %v1152
    %v1541 = vpack.c.b16 %v1157, %v1153
    %v1542 = vpack.c.b16 %v1158, %v1154
    %v1543 = vpack.c.b16 %v1163, %v1159
    %v1544 = vpack.c.b16 %v1164, %v1160
    %v1545 = vpack.c.b16 %v1165, %v1161
    %v1546 = vpack.c.b16 %v1166, %v1162
    %v1547 = vpack.c.b16 %v1171, %v1167
    %v1548 = vpack.c.b16 %v1172, %v1168
    %v1549 = vpack.c.b16 %v1173, %v1169
    %v1550 = vpack.c.b16 %v1174, %v1170
    %v1551 = vpack.c.b16 %v1179, %v1175
    %v1552 = vpack.c.b16 %v1180, %v1176
    %v1553 = vpack.c.b16 %v1181, %v1177
    %v1554 = vpack.c.b16 %v1182, %v1178
    %v1555 = vpack.c.b16 %v1187, %v1183
    %v1556 = vpack.c.b16 %v1188, %v1184
    %v1557 = vpack.c.b16 %v1189, %v1185
    %v1558 = vpack.c.b16 %v1190, %v1186
    %v1559 = vpack.c.b16 %v1195, %v1191
    %v1560 = vpack.c.b16 %v1196, %v1192
    %v1561 = vpack.c.b16 %v1197, %v1193
    %v1562 = vpack.c.b16 %v1198, %v1194
    %v1563 = vpack.c.b16 %v1203, %v1199
    %v1564 = vpack.c.b16 %v1204, %v1200
    %v1565 = vpack.c.b16 %v1205, %v1201
    %v1566 = vpack.c.b16 %v1206, %v1202
    %v1567 = vpack.c.b16 %v1211, %v1207
    %v1568 = vpack.c.b16 %v1212, %v1208
    %v1569 = vpack.c.b16 %v1213, %v1209
    %v1570 = vpack.c.b16 %v1214, %v1210
    %v1571 = vpack.c.b16 %v1219, %v1215
    %v1572 = vpack.c.b16 %v1220, %v1216
    %v1573 = vpack.c.b16 %v1221, %v1217
    %v1574 = vpack.c.b16 %v1222, %v1218
    %v1575 = vpack.c.b16 %v1227, %v1223
    %v1576 = vpack.c.b16 %v1228, %v1224
    %v1577 = vpack.c.b16 %v1229, %v1225
    %v1578 = vpack.c.b16 %v1230, %v1226
    %v1579 = vpack.c.b16 %v1235, %v1231
    %v1580 = vpack.c.b16 %v1236, %v1232
    %v1581 = vpack.c.b16 %v1237, %v1233
    %v1582 = vpack.c.b16 %v1238, %v1234
    %v1583 = vpack.c.b16 %v1243, %v1239
    %v1584 = vpack.c.b16 %v1244, %v1240
    %v1585 = vpack.c.b16 %v1245, %v1241
    %v1586 = vpack.c.b16 %v1246, %v1242
    %v1587 = vpack.c.b16 %v1251, %v1247
    %v1588 = vpack.c.b16 %v1252, %v1248
    %v1589 = vpack.c.b16 %v1253, %v1249
    %v1590 = vpack.c.b16 %v1254, %v1250
    %v1591 = vpack.c.b16 %v1259, %v1255
    %v1592 = vpack.c.b16 %v1260, %v1256
    %v1593 = vpack.c.b16 %v1261, %v1257
    %v1594 = vpack.c.b16 %v1262, %v1258
    %v1595 = vpack.c.b16 %v1267, %v1263
    %v1596 = vpack.c.b16 %v1268, %v1264
    %v1597 = vpack.c.b16 %v1269, %v1265
    %v1598 = vpack.c.b16 %v1270, %v1266
    %v1599 = vpack.c.b16 %v1275, %v1271
    %v1600 = vpack.c.b16 %v1276, %v1272
    %v1601 = vpack.c.b16 %v1277, %v1273
    %v1602 = vpack.c.b16 %v1278, %v1274
    %v1603 = vpack.c.b16 %v1283, %v1279
    %v1604 = vpack.c.b16 %v1284, %v1280
    %v1605 = vpack.c.b16 %v1285, %v1281
    %v1606 = vpack.c.b16 %v1286, %v1282
    %v1607 = vpack.c.b16 %v1291, %v1287
    %v1608 = vpack.c.b16 %v1292, %v1288
    %v1609 = vpack.c.b16 %v1293, %v1289
    %v1610 = vpack.c.b16 %v1294, %v1290
    %v1611 = vpack.c.b16 %v1299, %v1295
    %v1612 = vpack.c.b16 %v1300, %v1296
    %v1613 = vpack.c.b16 %v1301, %v1297
    %v1614 = vpack.c.b16 %v1302, %v1298
    %v1615 = vpack.c.b16 %v1307, %v1303
    %v1616 = vpack.c.b16 %v1308, %v1304
    %v1617 = vpack.c.b16 %v1309, %v1305
    %v1618 = vpack.c.b16 %v1310, %v1306
    %v1619 = vpack.c.b16 %v1315, %v1311
    %v1620 = vpack.c.b16 %v1316, %v1312
    %v1621 = vpack.c.b16 %v1317, %v1313
    %v1622 = vpack.c.b16 %v1318, %v1314
    %v1623 = vpack.c.b16 %v1323, %v1319
    %v1624 = vpack.c.b16 %v1324, %v1320
    %v1625 = vpack.c.b16 %v1325, %v1321
    %v1626 = vpack.c.b16 %v1326, %v1322
    %v1627 = vpack.c.b16 %v1331, %v1327
    %v1628 = vpack.c.b16 %v1332, %v1328
    %v1629 = vpack.c.b16 %v1333, %v1329
    %v1630 = vpack.c.b16 %v1334, %v1330
    %v1631 = vpack.c.b16 %v1339, %v1335
    %v1632 = vpack.c.b16 %v1340, %v1336
    %v1633 = vpack.c.b16 %v1341, %v1337
    %v1634 = vpack.c.b16 %v1342, %v1338
    %v1635 = vpack.c.b16 %v1347, %v1343
    %v1636 = vpack.c.b16 %v1348, %v1344
    %v1637 = vpack.c.b16 %v1349, %v1345
    %v1638 = vpack.c.b16 %v1350, %v1346
    %v1639 = vpack.c.b16 %v1355, %v1351
    %v1640 = vpack.c.b16 %v1356, %v1352
    %v1641 = vpack.c.b16 %v1357, %v1353
    %v1642 = vpack.c.b16 %v1358, %v1354
    %v1643 = vpack.c.b16 %v1363, %v1359
    %v1644 = vpack.c.b16 %v1364, %v1360
    %v1645 = vpack.c.b16 %v1365, %v1361
    %v1646 = vpack.c.b16 %v1366, %v1362
    %v1647 = vpack.c.b16 %v1371, %v1367
    %v1648 = vpack.c.b16 %v1372, %v1368
    %v1649 = vpack.c.b16 %v1373, %v1369
    %v1650 = vpack.c.b16 %v1374, %v1370
    %v1651 = vpack.c.b16 %v1379, %v1375
    %v1652 = vpack.c.b16 %v1380, %v1376
    %v1653 = vpack.c.b16 %v1381, %v1377
    %v1654 = vpack.c.b16 %v1382, %v1378
    %v1655 = vpack.c.b16 %v1387, %v1383
    %v1656 = vpack.c.b16 %v1388, %v1384
    %v1657 = vpack.c.b16 %v1389, %v1385
    %v1658 = vpack.c.b16 %v1390, %v1386
    %v1659 = vpack.c.b16 %v1395, %v1391
    %v1660 = vpack.c.b16 %v1396, %v1392
    %v1661 = vpack.c.b16 %v1397, %v1393
    %v1662 = vpack.c.b16 %v1398, %v1394
    %v1663 = vpack.c.b16 %v1403, %v1399
    %v1664 = vpack.c.b16 %v1404, %v1400
    %v1665 = vpack.c.b16 %v1405, %v1401
    %v1666 = vpack.c.b16 %v1406, %v1402
    %v1667 = vpack.c.b16 %v1411, %v1407
    %v1668 = vpack.c.b16 %v1412, %v1408
    %v1669 = vpack.c.b16 %v1413, %v1409
    %v1670 = vpack.c.b16 %v1414, %v1410
    %1927 = vmatpush.bf16.msra.mxu0 %v1443
    %1928 = vmatpush.bf16.msra.mxu0 %v1439
    %1929 = vmatpush.bf16.msra.mxu0 %v1435
    %1930 = vmatpush.bf16.msra.mxu0 %v1431
    %1931 = vmatpush.bf16.msra.mxu0 %v1427
    %1932 = vmatpush.bf16.msra.mxu0 %v1423
    %1933 = vmatpush.bf16.msra.mxu0 %v1419
    %1934 = vmatpush.bf16.msra.mxu0 %v1415
    %1935 = vmatmul.bf16.gmra.mxu0 %v373
    %v1936 = vpop.f32.mrf.mxu0
    %v1937 = vadd.f32 %v639, %v1936
    %v1938 = vpop.f32.mrf.mxu0
    %v1939 = vadd.f32 %v639, %v1938
    %1940 = vdwg.mxu0
    %1941 = vmatpush.bf16.msra.mxu0 %v1475
    %1942 = vmatpush.bf16.msra.mxu0 %v1471
    %1943 = vmatpush.bf16.msra.mxu0 %v1467
    %1944 = vmatpush.bf16.msra.mxu0 %v1463
    %1945 = vmatpush.bf16.msra.mxu0 %v1459
    %1946 = vmatpush.bf16.msra.mxu0 %v1455
    %1947 = vmatpush.bf16.msra.mxu0 %v1451
    %1948 = vmatpush.bf16.msra.mxu0 %v1447
    %1949 = vmatmul.bf16.gmra.mxu0 %v374
    %v1950 = vpop.f32.mrf.mxu0
    %v1951 = vadd.f32 %v1937, %v1950
    %v1952 = vpop.f32.mrf.mxu0
    %v1953 = vadd.f32 %v1939, %v1952
    %1954 = vdwg.mxu0
    %1955 = vmatpush.bf16.msra.mxu0 %v1507
    %1956 = vmatpush.bf16.msra.mxu0 %v1503
    %1957 = vmatpush.bf16.msra.mxu0 %v1499
    %1958 = vmatpush.bf16.msra.mxu0 %v1495
    %1959 = vmatpush.bf16.msra.mxu0 %v1491
    %1960 = vmatpush.bf16.msra.mxu0 %v1487
    %1961 = vmatpush.bf16.msra.mxu0 %v1483
    %1962 = vmatpush.bf16.msra.mxu0 %v1479
    %1963 = vmatmul.bf16.gmra.mxu0 %v375
    %v1964 = vpop.f32.mrf.mxu0
    %v1965 = vadd.f32 %v1951, %v1964
    %v1966 = vpop.f32.mrf.mxu0
    %v1967 = vadd.f32 %v1953, %v1966
    %1968 = vdwg.mxu0
    %1969 = vmatpush.bf16.msra.mxu0 %v1539
    %1970 = vmatpush.bf16.msra.mxu0 %v1535
    %1971 = vmatpush.bf16.msra.mxu0 %v1531
    %1972 = vmatpush.bf16.msra.mxu0 %v1527
    %1973 = vmatpush.bf16.msra.mxu0 %v1523
    %1974 = vmatpush.bf16.msra.mxu0 %v1519
    %1975 = vmatpush.bf16.msra.mxu0 %v1515
    %1976 = vmatpush.bf16.msra.mxu0 %v1511
    %1977 = vmatmul.bf16.gmra.mxu0 %v376
    %v1978 = vpop.f32.mrf.mxu0
    %v1979 = vadd.f32 %v1965, %v1978
    %v1980 = vpop.f32.mrf.mxu0
    %v1981 = vadd.f32 %v1967, %v1980
    %1982 = vdwg.mxu0
    %1983 = vmatpush.bf16.msra.mxu0 %v1571
    %1984 = vmatpush.bf16.msra.mxu0 %v1567
    %1985 = vmatpush.bf16.msra.mxu0 %v1563
    %1986 = vmatpush.bf16.msra.mxu0 %v1559
    %1987 = vmatpush.bf16.msra.mxu0 %v1555
    %1988 = vmatpush.bf16.msra.mxu0 %v1551
    %1989 = vmatpush.bf16.msra.mxu0 %v1547
    %1990 = vmatpush.bf16.msra.mxu0 %v1543
    %1991 = vmatmul.bf16.gmra.mxu0 %v377
    %v1992 = vpop.f32.mrf.mxu0
    %v1993 = vadd.f32 %v1979, %v1992
    %v1994 = vpop.f32.mrf.mxu0
    %v1995 = vadd.f32 %v1981, %v1994
    %1996 = vdwg.mxu0
    %1997 = vmatpush.bf16.msra.mxu0 %v1603
    %1998 = vmatpush.bf16.msra.mxu0 %v1599
    %1999 = vmatpush.bf16.msra.mxu0 %v1595
    %2000 = vmatpush.bf16.msra.mxu0 %v1591
    %2001 = vmatpush.bf16.msra.mxu0 %v1587
    %2002 = vmatpush.bf16.msra.mxu0 %v1583
    %2003 = vmatpush.bf16.msra.mxu0 %v1579
    %2004 = vmatpush.bf16.msra.mxu0 %v1575
    %2005 = vmatmul.bf16.gmra.mxu0 %v378
    %v2006 = vpop.f32.mrf.mxu0
    %v2007 = vadd.f32 %v1993, %v2006
    %v2008 = vpop.f32.mrf.mxu0
    %v2009 = vadd.f32 %v1995, %v2008
    %2010 = vdwg.mxu0
    %2011 = vmatpush.bf16.msra.mxu0 %v1635
    %2012 = vmatpush.bf16.msra.mxu0 %v1631
    %2013 = vmatpush.bf16.msra.mxu0 %v1627
    %2014 = vmatpush.bf16.msra.mxu0 %v1623
    %2015 = vmatpush.bf16.msra.mxu0 %v1619
    %2016 = vmatpush.bf16.msra.mxu0 %v1615
    %2017 = vmatpush.bf16.msra.mxu0 %v1611
    %2018 = vmatpush.bf16.msra.mxu0 %v1607
    %2019 = vmatmul.bf16.gmra.mxu0 %v379
    %v2020 = vpop.f32.mrf.mxu0
    %v2021 = vadd.f32 %v2007, %v2020
    %v2022 = vpop.f32.mrf.mxu0
    %v2023 = vadd.f32 %v2009, %v2022
    %2024 = vdwg.mxu0
    %2025 = vmatpush.bf16.msra.mxu0 %v1667
    %2026 = vmatpush.bf16.msra.mxu0 %v1663
    %2027 = vmatpush.bf16.msra.mxu0 %v1659
    %2028 = vmatpush.bf16.msra.mxu0 %v1655
    %2029 = vmatpush.bf16.msra.mxu0 %v1651
    %2030 = vmatpush.bf16.msra.mxu0 %v1647
    %2031 = vmatpush.bf16.msra.mxu0 %v1643
    %2032 = vmatpush.bf16.msra.mxu0 %v1639
    %2033 = vmatmul.bf16.gmra.mxu0 %v380
    %v2034 = vpop.f32.mrf.mxu0
    %v2035 = vadd.f32 %v2021, %v2034
    %v2036 = vpop.f32.mrf.mxu0
    %v2037 = vadd.f32 %v2023, %v2036
    %2038 = vdwg.mxu0
    %2039 = vmatpush.bf16.msra.mxu0 %v1444
    %2040 = vmatpush.bf16.msra.mxu0 %v1440
    %2041 = vmatpush.bf16.msra.mxu0 %v1436
    %2042 = vmatpush.bf16.msra.mxu0 %v1432
    %2043 = vmatpush.bf16.msra.mxu0 %v1428
    %2044 = vmatpush.bf16.msra.mxu0 %v1424
    %2045 = vmatpush.bf16.msra.mxu0 %v1420
    %2046 = vmatpush.bf16.msra.mxu0 %v1416
    %2047 = vmatmul.bf16.gmra.mxu0 %v373
    %v2048 = vpop.f32.mrf.mxu0
    %v2049 = vadd.f32 %v640, %v2048
    %v2050 = vpop.f32.mrf.mxu0
    %v2051 = vadd.f32 %v640, %v2050
    %2052 = vdwg.mxu0
    %2053 = vmatpush.bf16.msra.mxu0 %v1476
    %2054 = vmatpush.bf16.msra.mxu0 %v1472
    %2055 = vmatpush.bf16.msra.mxu0 %v1468
    %2056 = vmatpush.bf16.msra.mxu0 %v1464
    %2057 = vmatpush.bf16.msra.mxu0 %v1460
    %2058 = vmatpush.bf16.msra.mxu0 %v1456
    %2059 = vmatpush.bf16.msra.mxu0 %v1452
    %2060 = vmatpush.bf16.msra.mxu0 %v1448
    %2061 = vmatmul.bf16.gmra.mxu0 %v374
    %v2062 = vpop.f32.mrf.mxu0
    %v2063 = vadd.f32 %v2049, %v2062
    %v2064 = vpop.f32.mrf.mxu0
    %v2065 = vadd.f32 %v2051, %v2064
    %2066 = vdwg.mxu0
    %2067 = vmatpush.bf16.msra.mxu0 %v1508
    %2068 = vmatpush.bf16.msra.mxu0 %v1504
    %2069 = vmatpush.bf16.msra.mxu0 %v1500
    %2070 = vmatpush.bf16.msra.mxu0 %v1496
    %2071 = vmatpush.bf16.msra.mxu0 %v1492
    %2072 = vmatpush.bf16.msra.mxu0 %v1488
    %2073 = vmatpush.bf16.msra.mxu0 %v1484
    %2074 = vmatpush.bf16.msra.mxu0 %v1480
    %2075 = vmatmul.bf16.gmra.mxu0 %v375
    %v2076 = vpop.f32.mrf.mxu0
    %v2077 = vadd.f32 %v2063, %v2076
    %v2078 = vpop.f32.mrf.mxu0
    %v2079 = vadd.f32 %v2065, %v2078
    %2080 = vdwg.mxu0
    %2081 = vmatpush.bf16.msra.mxu0 %v1540
    %2082 = vmatpush.bf16.msra.mxu0 %v1536
    %2083 = vmatpush.bf16.msra.mxu0 %v1532
    %2084 = vmatpush.bf16.msra.mxu0 %v1528
    %2085 = vmatpush.bf16.msra.mxu0 %v1524
    %2086 = vmatpush.bf16.msra.mxu0 %v1520
    %2087 = vmatpush.bf16.msra.mxu0 %v1516
    %2088 = vmatpush.bf16.msra.mxu0 %v1512
    %2089 = vmatmul.bf16.gmra.mxu0 %v376
    %v2090 = vpop.f32.mrf.mxu0
    %v2091 = vadd.f32 %v2077, %v2090
    %v2092 = vpop.f32.mrf.mxu0
    %v2093 = vadd.f32 %v2079, %v2092
    %2094 = vdwg.mxu0
    %2095 = vmatpush.bf16.msra.mxu0 %v1572
    %2096 = vmatpush.bf16.msra.mxu0 %v1568
    %2097 = vmatpush.bf16.msra.mxu0 %v1564
    %2098 = vmatpush.bf16.msra.mxu0 %v1560
    %2099 = vmatpush.bf16.msra.mxu0 %v1556
    %2100 = vmatpush.bf16.msra.mxu0 %v1552
    %2101 = vmatpush.bf16.msra.mxu0 %v1548
    %2102 = vmatpush.bf16.msra.mxu0 %v1544
    %2103 = vmatmul.bf16.gmra.mxu0 %v377
    %v2104 = vpop.f32.mrf.mxu0
    %v2105 = vadd.f32 %v2091, %v2104
    %v2106 = vpop.f32.mrf.mxu0
    %v2107 = vadd.f32 %v2093, %v2106
    %2108 = vdwg.mxu0
    %2109 = vmatpush.bf16.msra.mxu0 %v1604
    %2110 = vmatpush.bf16.msra.mxu0 %v1600
    %2111 = vmatpush.bf16.msra.mxu0 %v1596
    %2112 = vmatpush.bf16.msra.mxu0 %v1592
    %2113 = vmatpush.bf16.msra.mxu0 %v1588
    %2114 = vmatpush.bf16.msra.mxu0 %v1584
    %2115 = vmatpush.bf16.msra.mxu0 %v1580
    %2116 = vmatpush.bf16.msra.mxu0 %v1576
    %2117 = vmatmul.bf16.gmra.mxu0 %v378
    %v2118 = vpop.f32.mrf.mxu0
    %v2119 = vadd.f32 %v2105, %v2118
    %v2120 = vpop.f32.mrf.mxu0
    %v2121 = vadd.f32 %v2107, %v2120
    %2122 = vdwg.mxu0
    %2123 = vmatpush.bf16.msra.mxu0 %v1636
    %2124 = vmatpush.bf16.msra.mxu0 %v1632
    %2125 = vmatpush.bf16.msra.mxu0 %v1628
    %2126 = vmatpush.bf16.msra.mxu0 %v1624
    %2127 = vmatpush.bf16.msra.mxu0 %v1620
    %2128 = vmatpush.bf16.msra.mxu0 %v1616
    %2129 = vmatpush.bf16.msra.mxu0 %v1612
    %2130 = vmatpush.bf16.msra.mxu0 %v1608
    %2131 = vmatmul.bf16.gmra.mxu0 %v379
    %v2132 = vpop.f32.mrf.mxu0
    %v2133 = vadd.f32 %v2119, %v2132
    %v2134 = vpop.f32.mrf.mxu0
    %v2135 = vadd.f32 %v2121, %v2134
    %2136 = vdwg.mxu0
    %2137 = vmatpush.bf16.msra.mxu0 %v1668
    %2138 = vmatpush.bf16.msra.mxu0 %v1664
    %2139 = vmatpush.bf16.msra.mxu0 %v1660
    %2140 = vmatpush.bf16.msra.mxu0 %v1656
    %2141 = vmatpush.bf16.msra.mxu0 %v1652
    %2142 = vmatpush.bf16.msra.mxu0 %v1648
    %2143 = vmatpush.bf16.msra.mxu0 %v1644
    %2144 = vmatpush.bf16.msra.mxu0 %v1640
    %2145 = vmatmul.bf16.gmra.mxu0 %v380
    %v2146 = vpop.f32.mrf.mxu0
    %v2147 = vadd.f32 %v2133, %v2146
    %v2148 = vpop.f32.mrf.mxu0
    %v2149 = vadd.f32 %v2135, %v2148
    %2150 = vdwg.mxu0
    %2151 = vmatpush.bf16.msra.mxu0 %v1445
    %2152 = vmatpush.bf16.msra.mxu0 %v1441
    %2153 = vmatpush.bf16.msra.mxu0 %v1437
    %2154 = vmatpush.bf16.msra.mxu0 %v1433
    %2155 = vmatpush.bf16.msra.mxu0 %v1429
    %2156 = vmatpush.bf16.msra.mxu0 %v1425
    %2157 = vmatpush.bf16.msra.mxu0 %v1421
    %2158 = vmatpush.bf16.msra.mxu0 %v1417
    %2159 = vmatmul.bf16.gmra.mxu0 %v373
    %v2160 = vpop.f32.mrf.mxu0
    %v2161 = vadd.f32 %v641, %v2160
    %v2162 = vpop.f32.mrf.mxu0
    %v2163 = vadd.f32 %v641, %v2162
    %2164 = vdwg.mxu0
    %2165 = vmatpush.bf16.msra.mxu0 %v1477
    %2166 = vmatpush.bf16.msra.mxu0 %v1473
    %2167 = vmatpush.bf16.msra.mxu0 %v1469
    %2168 = vmatpush.bf16.msra.mxu0 %v1465
    %2169 = vmatpush.bf16.msra.mxu0 %v1461
    %2170 = vmatpush.bf16.msra.mxu0 %v1457
    %2171 = vmatpush.bf16.msra.mxu0 %v1453
    %2172 = vmatpush.bf16.msra.mxu0 %v1449
    %2173 = vmatmul.bf16.gmra.mxu0 %v374
    %v2174 = vpop.f32.mrf.mxu0
    %v2175 = vadd.f32 %v2161, %v2174
    %v2176 = vpop.f32.mrf.mxu0
    %v2177 = vadd.f32 %v2163, %v2176
    %2178 = vdwg.mxu0
    %2179 = vmatpush.bf16.msra.mxu0 %v1509
    %2180 = vmatpush.bf16.msra.mxu0 %v1505
    %2181 = vmatpush.bf16.msra.mxu0 %v1501
    %2182 = vmatpush.bf16.msra.mxu0 %v1497
    %2183 = vmatpush.bf16.msra.mxu0 %v1493
    %2184 = vmatpush.bf16.msra.mxu0 %v1489
    %2185 = vmatpush.bf16.msra.mxu0 %v1485
    %2186 = vmatpush.bf16.msra.mxu0 %v1481
    %2187 = vmatmul.bf16.gmra.mxu0 %v375
    %v2188 = vpop.f32.mrf.mxu0
    %v2189 = vadd.f32 %v2175, %v2188
    %v2190 = vpop.f32.mrf.mxu0
    %v2191 = vadd.f32 %v2177, %v2190
    %2192 = vdwg.mxu0
    %2193 = vmatpush.bf16.msra.mxu0 %v1541
    %2194 = vmatpush.bf16.msra.mxu0 %v1537
    %2195 = vmatpush.bf16.msra.mxu0 %v1533
    %2196 = vmatpush.bf16.msra.mxu0 %v1529
    %2197 = vmatpush.bf16.msra.mxu0 %v1525
    %2198 = vmatpush.bf16.msra.mxu0 %v1521
    %2199 = vmatpush.bf16.msra.mxu0 %v1517
    %2200 = vmatpush.bf16.msra.mxu0 %v1513
    %2201 = vmatmul.bf16.gmra.mxu0 %v376
    %v2202 = vpop.f32.mrf.mxu0
    %v2203 = vadd.f32 %v2189, %v2202
    %v2204 = vpop.f32.mrf.mxu0
    %v2205 = vadd.f32 %v2191, %v2204
    %2206 = vdwg.mxu0
    %2207 = vmatpush.bf16.msra.mxu0 %v1573
    %2208 = vmatpush.bf16.msra.mxu0 %v1569
    %2209 = vmatpush.bf16.msra.mxu0 %v1565
    %2210 = vmatpush.bf16.msra.mxu0 %v1561
    %2211 = vmatpush.bf16.msra.mxu0 %v1557
    %2212 = vmatpush.bf16.msra.mxu0 %v1553
    %2213 = vmatpush.bf16.msra.mxu0 %v1549
    %2214 = vmatpush.bf16.msra.mxu0 %v1545
    %2215 = vmatmul.bf16.gmra.mxu0 %v377
    %v2216 = vpop.f32.mrf.mxu0
    %v2217 = vadd.f32 %v2203, %v2216
    %v2218 = vpop.f32.mrf.mxu0
    %v2219 = vadd.f32 %v2205, %v2218
    %2220 = vdwg.mxu0
    %2221 = vmatpush.bf16.msra.mxu0 %v1605
    %2222 = vmatpush.bf16.msra.mxu0 %v1601
    %2223 = vmatpush.bf16.msra.mxu0 %v1597
    %2224 = vmatpush.bf16.msra.mxu0 %v1593
    %2225 = vmatpush.bf16.msra.mxu0 %v1589
    %2226 = vmatpush.bf16.msra.mxu0 %v1585
    %2227 = vmatpush.bf16.msra.mxu0 %v1581
    %2228 = vmatpush.bf16.msra.mxu0 %v1577
    %2229 = vmatmul.bf16.gmra.mxu0 %v378
    %v2230 = vpop.f32.mrf.mxu0
    %v2231 = vadd.f32 %v2217, %v2230
    %v2232 = vpop.f32.mrf.mxu0
    %v2233 = vadd.f32 %v2219, %v2232
    %2234 = vdwg.mxu0
    %2235 = vmatpush.bf16.msra.mxu0 %v1637
    %2236 = vmatpush.bf16.msra.mxu0 %v1633
    %2237 = vmatpush.bf16.msra.mxu0 %v1629
    %2238 = vmatpush.bf16.msra.mxu0 %v1625
    %2239 = vmatpush.bf16.msra.mxu0 %v1621
    %2240 = vmatpush.bf16.msra.mxu0 %v1617
    %2241 = vmatpush.bf16.msra.mxu0 %v1613
    %2242 = vmatpush.bf16.msra.mxu0 %v1609
    %2243 = vmatmul.bf16.gmra.mxu0 %v379
    %v2244 = vpop.f32.mrf.mxu0
    %v2245 = vadd.f32 %v2231, %v2244
    %v2246 = vpop.f32.mrf.mxu0
    %v2247 = vadd.f32 %v2233, %v2246
    %2248 = vdwg.mxu0
    %2249 = vmatpush.bf16.msra.mxu0 %v1669
    %2250 = vmatpush.bf16.msra.mxu0 %v1665
    %2251 = vmatpush.bf16.msra.mxu0 %v1661
    %2252 = vmatpush.bf16.msra.mxu0 %v1657
    %2253 = vmatpush.bf16.msra.mxu0 %v1653
    %2254 = vmatpush.bf16.msra.mxu0 %v1649
    %2255 = vmatpush.bf16.msra.mxu0 %v1645
    %2256 = vmatpush.bf16.msra.mxu0 %v1641
    %2257 = vmatmul.bf16.gmra.mxu0 %v380
    %v2258 = vpop.f32.mrf.mxu0
    %v2259 = vadd.f32 %v2245, %v2258
    %v2260 = vpop.f32.mrf.mxu0
    %v2261 = vadd.f32 %v2247, %v2260
    %2262 = vdwg.mxu0
    %2263 = vmatpush.bf16.msra.mxu0 %v1446
    %2264 = vmatpush.bf16.msra.mxu0 %v1442
    %2265 = vmatpush.bf16.msra.mxu0 %v1438
    %2266 = vmatpush.bf16.msra.mxu0 %v1434
    %2267 = vmatpush.bf16.msra.mxu0 %v1430
    %2268 = vmatpush.bf16.msra.mxu0 %v1426
    %2269 = vmatpush.bf16.msra.mxu0 %v1422
    %2270 = vmatpush.bf16.msra.mxu0 %v1418
    %2271 = vmatmul.bf16.gmra.mxu0 %v373
    %v2272 = vpop.f32.mrf.mxu0
    %v2273 = vadd.f32 %v642, %v2272
    %v2274 = vpop.f32.mrf.mxu0
    %v2275 = vadd.f32 %v642, %v2274
    %2276 = vdwg.mxu0
    %2277 = vmatpush.bf16.msra.mxu0 %v1478
    %2278 = vmatpush.bf16.msra.mxu0 %v1474
    %2279 = vmatpush.bf16.msra.mxu0 %v1470
    %2280 = vmatpush.bf16.msra.mxu0 %v1466
    %2281 = vmatpush.bf16.msra.mxu0 %v1462
    %2282 = vmatpush.bf16.msra.mxu0 %v1458
    %2283 = vmatpush.bf16.msra.mxu0 %v1454
    %2284 = vmatpush.bf16.msra.mxu0 %v1450
    %2285 = vmatmul.bf16.gmra.mxu0 %v374
    %v2286 = vpop.f32.mrf.mxu0
    %v2287 = vadd.f32 %v2273, %v2286
    %v2288 = vpop.f32.mrf.mxu0
    %v2289 = vadd.f32 %v2275, %v2288
    %2290 = vdwg.mxu0
    %2291 = vmatpush.bf16.msra.mxu0 %v1510
    %2292 = vmatpush.bf16.msra.mxu0 %v1506
    %2293 = vmatpush.bf16.msra.mxu0 %v1502
    %2294 = vmatpush.bf16.msra.mxu0 %v1498
    %2295 = vmatpush.bf16.msra.mxu0 %v1494
    %2296 = vmatpush.bf16.msra.mxu0 %v1490
    %2297 = vmatpush.bf16.msra.mxu0 %v1486
    %2298 = vmatpush.bf16.msra.mxu0 %v1482
    %2299 = vmatmul.bf16.gmra.mxu0 %v375
    %v2300 = vpop.f32.mrf.mxu0
    %v2301 = vadd.f32 %v2287, %v2300
    %v2302 = vpop.f32.mrf.mxu0
    %v2303 = vadd.f32 %v2289, %v2302
    %2304 = vdwg.mxu0
    %2305 = vmatpush.bf16.msra.mxu0 %v1542
    %2306 = vmatpush.bf16.msra.mxu0 %v1538
    %2307 = vmatpush.bf16.msra.mxu0 %v1534
    %2308 = vmatpush.bf16.msra.mxu0 %v1530
    %2309 = vmatpush.bf16.msra.mxu0 %v1526
    %2310 = vmatpush.bf16.msra.mxu0 %v1522
    %2311 = vmatpush.bf16.msra.mxu0 %v1518
    %2312 = vmatpush.bf16.msra.mxu0 %v1514
    %2313 = vmatmul.bf16.gmra.mxu0 %v376
    %v2314 = vpop.f32.mrf.mxu0
    %v2315 = vadd.f32 %v2301, %v2314
    %v2316 = vpop.f32.mrf.mxu0
    %v2317 = vadd.f32 %v2303, %v2316
    %2318 = vdwg.mxu0
    %2319 = vmatpush.bf16.msra.mxu0 %v1574
    %2320 = vmatpush.bf16.msra.mxu0 %v1570
    %2321 = vmatpush.bf16.msra.mxu0 %v1566
    %2322 = vmatpush.bf16.msra.mxu0 %v1562
    %2323 = vmatpush.bf16.msra.mxu0 %v1558
    %2324 = vmatpush.bf16.msra.mxu0 %v1554
    %2325 = vmatpush.bf16.msra.mxu0 %v1550
    %2326 = vmatpush.bf16.msra.mxu0 %v1546
    %2327 = vmatmul.bf16.gmra.mxu0 %v377
    %v2328 = vpop.f32.mrf.mxu0
    %v2329 = vadd.f32 %v2315, %v2328
    %v2330 = vpop.f32.mrf.mxu0
    %v2331 = vadd.f32 %v2317, %v2330
    %2332 = vdwg.mxu0
    %2333 = vmatpush.bf16.msra.mxu0 %v1606
    %2334 = vmatpush.bf16.msra.mxu0 %v1602
    %2335 = vmatpush.bf16.msra.mxu0 %v1598
    %2336 = vmatpush.bf16.msra.mxu0 %v1594
    %2337 = vmatpush.bf16.msra.mxu0 %v1590
    %2338 = vmatpush.bf16.msra.mxu0 %v1586
    %2339 = vmatpush.bf16.msra.mxu0 %v1582
    %2340 = vmatpush.bf16.msra.mxu0 %v1578
    %2341 = vmatmul.bf16.gmra.mxu0 %v378
    %v2342 = vpop.f32.mrf.mxu0
    %v2343 = vadd.f32 %v2329, %v2342
    %v2344 = vpop.f32.mrf.mxu0
    %v2345 = vadd.f32 %v2331, %v2344
    %2346 = vdwg.mxu0
    %2347 = vmatpush.bf16.msra.mxu0 %v1638
    %2348 = vmatpush.bf16.msra.mxu0 %v1634
    %2349 = vmatpush.bf16.msra.mxu0 %v1630
    %2350 = vmatpush.bf16.msra.mxu0 %v1626
    %2351 = vmatpush.bf16.msra.mxu0 %v1622
    %2352 = vmatpush.bf16.msra.mxu0 %v1618
    %2353 = vmatpush.bf16.msra.mxu0 %v1614
    %2354 = vmatpush.bf16.msra.mxu0 %v1610
    %2355 = vmatmul.bf16.gmra.mxu0 %v379
    %v2356 = vpop.f32.mrf.mxu0
    %v2357 = vadd.f32 %v2343, %v2356
    %v2358 = vpop.f32.mrf.mxu0
    %v2359 = vadd.f32 %v2345, %v2358
    %2360 = vdwg.mxu0
    %2361 = vmatpush.bf16.msra.mxu0 %v1670
    %2362 = vmatpush.bf16.msra.mxu0 %v1666
    %2363 = vmatpush.bf16.msra.mxu0 %v1662
    %2364 = vmatpush.bf16.msra.mxu0 %v1658
    %2365 = vmatpush.bf16.msra.mxu0 %v1654
    %2366 = vmatpush.bf16.msra.mxu0 %v1650
    %2367 = vmatpush.bf16.msra.mxu0 %v1646
    %2368 = vmatpush.bf16.msra.mxu0 %v1642
    %2369 = vmatmul.bf16.gmra.mxu0 %v380
    %v2370 = vpop.f32.mrf.mxu0
    %v2371 = vadd.f32 %v2357, %v2370
    %v2372 = vpop.f32.mrf.mxu0
    %v2373 = vadd.f32 %v2359, %v2372
    %2374 = vdwg.mxu0
    %s2375 = sld [smem:[#allocation2 + $0x1]]
    %vm2376 = vcmp.gt.f32.partialorder %v2035, 0.0
    %vm2377 = vcmp.gt.f32.partialorder %v2147, 0.0
    %vm2378 = vcmp.gt.f32.partialorder %v2259, 0.0
    %vm2379 = vcmp.gt.f32.partialorder %v2371, 0.0
    %vm2380 = vcmp.gt.f32.partialorder %v2037, 0.0
    %vm2381 = vcmp.gt.f32.partialorder %v2149, 0.0
    %vm2382 = vcmp.gt.f32.partialorder %v2261, 0.0
    %vm2383 = vcmp.gt.f32.partialorder %v2373, 0.0
    %v2384 = vstv %s2375
    %v2385 = vmul.f32 %v2384, %v2035
    %v2386 = vmul.f32 %v2384, %v2147
    %v2387 = vmul.f32 %v2384, %v2259
    %v2388 = vmul.f32 %v2384, %v2371
    %v2389 = vmul.f32 %v2384, %v2037
    %v2390 = vmul.f32 %v2384, %v2149
    %v2391 = vmul.f32 %v2384, %v2261
    %v2392 = vmul.f32 %v2384, %v2373
    %v2393 = vsel %vm2376, %v2035, %v2385
    %v2394 = vsel %vm2377, %v2147, %v2386
    %v2395 = vsel %vm2378, %v2259, %v2387
    %v2396 = vsel %vm2379, %v2371, %v2388
    %v2397 = vsel %vm2380, %v2037, %v2389
    %v2398 = vsel %vm2381, %v2149, %v2390
    %v2399 = vsel %vm2382, %v2261, %v2391
    %v2400 = vsel %vm2383, %v2373, %v2392
    %v2401 = vpack.c.bf16 %v2397, %v2393
    %v2402 = vpack.c.bf16 %v2398, %v2394
    %v2403 = vpack.c.bf16 %v2399, %v2395
    %v2404 = vpack.c.bf16 %v2400, %v2396
    %v2405 = vld [vmem:[#allocation8] sm:$0xf]
    %v2406 = vld [vmem:[#allocation8 + $0x4] sm:$0xf]
    %v2407 = vld [vmem:[#allocation8 + $0x8] sm:$0xf]
    %v2408 = vld [vmem:[#allocation8 + $0xc] sm:$0xf]
    %v2409 = vld [vmem:[#allocation8 + $0x10] sm:$0xf]
    %v2410 = vld [vmem:[#allocation8 + $0x14] sm:$0xf]
    %v2411 = vld [vmem:[#allocation8 + $0x18] sm:$0xf]
    %v2412 = vld [vmem:[#allocation8 + $0x1c] sm:$0xf]
    %v2413 = vld [vmem:[#allocation8 + $0x20] sm:$0xf]
    %v2414 = vld [vmem:[#allocation8 + $0x24] sm:$0xf]
    %v2415 = vld [vmem:[#allocation8 + $0x28] sm:$0xf]
    %v2416 = vld [vmem:[#allocation8 + $0x2c] sm:$0xf]
    %v2417 = vld [vmem:[#allocation8 + $0x30] sm:$0xf]
    %v2418 = vld [vmem:[#allocation8 + $0x34] sm:$0xf]
    %v2419 = vld [vmem:[#allocation8 + $0x38] sm:$0xf]
    %v2420 = vld [vmem:[#allocation8 + $0x3c] sm:$0xf]
    %v2421 = vld [vmem:[#allocation8 + $0x40] sm:$0xf]
    %v2422 = vld [vmem:[#allocation8 + $0x44] sm:$0xf]
    %v2423 = vld [vmem:[#allocation8 + $0x48] sm:$0xf]
    %v2424 = vld [vmem:[#allocation8 + $0x4c] sm:$0xf]
    %v2425 = vld [vmem:[#allocation8 + $0x50] sm:$0xf]
    %v2426 = vld [vmem:[#allocation8 + $0x54] sm:$0xf]
    %v2427 = vld [vmem:[#allocation8 + $0x58] sm:$0xf]
    %v2428 = vld [vmem:[#allocation8 + $0x5c] sm:$0xf]
    %v2429 = vld [vmem:[#allocation8 + $0x60] sm:$0xf]
    %v2430 = vld [vmem:[#allocation8 + $0x64] sm:$0xf]
    %v2431 = vld [vmem:[#allocation8 + $0x68] sm:$0xf]
    %v2432 = vld [vmem:[#allocation8 + $0x6c] sm:$0xf]
    %v2433 = vld [vmem:[#allocation8 + $0x70] sm:$0xf]
    %v2434 = vld [vmem:[#allocation8 + $0x74] sm:$0xf]
    %v2435 = vld [vmem:[#allocation8 + $0x78] sm:$0xf]
    %v2436 = vld [vmem:[#allocation8 + $0x7c] sm:$0xf]
    %v2437 = vld [vmem:[#allocation8 + $0x80] sm:$0xf]
    %v2438 = vld [vmem:[#allocation8 + $0x84] sm:$0xf]
    %v2439 = vld [vmem:[#allocation8 + $0x88] sm:$0xf]
    %v2440 = vld [vmem:[#allocation8 + $0x8c] sm:$0xf]
    %v2441 = vld [vmem:[#allocation8 + $0x90] sm:$0xf]
    %v2442 = vld [vmem:[#allocation8 + $0x94] sm:$0xf]
    %v2443 = vld [vmem:[#allocation8 + $0x98] sm:$0xf]
    %v2444 = vld [vmem:[#allocation8 + $0x9c] sm:$0xf]
    %v2445 = vld [vmem:[#allocation8 + $0xa0] sm:$0xf]
    %v2446 = vld [vmem:[#allocation8 + $0xa4] sm:$0xf]
    %v2447 = vld [vmem:[#allocation8 + $0xa8] sm:$0xf]
    %v2448 = vld [vmem:[#allocation8 + $0xac] sm:$0xf]
    %v2449 = vld [vmem:[#allocation8 + $0xb0] sm:$0xf]
    %v2450 = vld [vmem:[#allocation8 + $0xb4] sm:$0xf]
    %v2451 = vld [vmem:[#allocation8 + $0xb8] sm:$0xf]
    %v2452 = vld [vmem:[#allocation8 + $0xbc] sm:$0xf]
    %v2453 = vld [vmem:[#allocation8 + $0xc0] sm:$0xf]
    %v2454 = vld [vmem:[#allocation8 + $0xc4] sm:$0xf]
    %v2455 = vld [vmem:[#allocation8 + $0xc8] sm:$0xf]
    %v2456 = vld [vmem:[#allocation8 + $0xcc] sm:$0xf]
    %v2457 = vld [vmem:[#allocation8 + $0xd0] sm:$0xf]
    %v2458 = vld [vmem:[#allocation8 + $0xd4] sm:$0xf]
    %v2459 = vld [vmem:[#allocation8 + $0xd8] sm:$0xf]
    %v2460 = vld [vmem:[#allocation8 + $0xdc] sm:$0xf]
    %v2461 = vld [vmem:[#allocation8 + $0xe0] sm:$0xf]
    %v2462 = vld [vmem:[#allocation8 + $0xe4] sm:$0xf]
    %v2463 = vld [vmem:[#allocation8 + $0xe8] sm:$0xf]
    %v2464 = vld [vmem:[#allocation8 + $0xec] sm:$0xf]
    %v2465 = vld [vmem:[#allocation8 + $0xf0] sm:$0xf]
    %v2466 = vld [vmem:[#allocation8 + $0xf4] sm:$0xf]
    %v2467 = vld [vmem:[#allocation8 + $0xf8] sm:$0xf]
    %v2468 = vld [vmem:[#allocation8 + $0xfc] sm:$0xf]
    %v2469 = vld [vmem:[%s7] sm:$0x1]
    %v2471 = vperm.slane %v2469, 0
    %v2537 = vunpack.c.l.b16 %v2405
    %v2538 = vunpack.c.l.b16 %v2406
    %v2539 = vunpack.c.l.b16 %v2407
    %v2540 = vunpack.c.l.b16 %v2408
    %v2541 = vunpack.c.l.b16 %v2409
    %v2542 = vunpack.c.l.b16 %v2410
    %v2543 = vunpack.c.l.b16 %v2411
    %v2544 = vunpack.c.l.b16 %v2412
    %v2545 = vunpack.c.l.b16 %v2413
    %v2546 = vunpack.c.l.b16 %v2414
    %v2547 = vunpack.c.l.b16 %v2415
    %v2548 = vunpack.c.l.b16 %v2416
    %v2549 = vunpack.c.l.b16 %v2417
    %v2550 = vunpack.c.l.b16 %v2418
    %v2551 = vunpack.c.l.b16 %v2419
    %v2552 = vunpack.c.l.b16 %v2420
    %v2553 = vunpack.c.l.b16 %v2421
    %v2554 = vunpack.c.l.b16 %v2422
    %v2555 = vunpack.c.l.b16 %v2423
    %v2556 = vunpack.c.l.b16 %v2424
    %v2557 = vunpack.c.l.b16 %v2425
    %v2558 = vunpack.c.l.b16 %v2426
    %v2559 = vunpack.c.l.b16 %v2427
    %v2560 = vunpack.c.l.b16 %v2428
    %v2561 = vunpack.c.l.b16 %v2429
    %v2562 = vunpack.c.l.b16 %v2430
    %v2563 = vunpack.c.l.b16 %v2431
    %v2564 = vunpack.c.l.b16 %v2432
    %v2565 = vunpack.c.l.b16 %v2433
    %v2566 = vunpack.c.l.b16 %v2434
    %v2567 = vunpack.c.l.b16 %v2435
    %v2568 = vunpack.c.l.b16 %v2436
    %v2569 = vunpack.c.l.b16 %v2437
    %v2570 = vunpack.c.l.b16 %v2438
    %v2571 = vunpack.c.l.b16 %v2439
    %v2572 = vunpack.c.l.b16 %v2440
    %v2573 = vunpack.c.l.b16 %v2441
    %v2574 = vunpack.c.l.b16 %v2442
    %v2575 = vunpack.c.l.b16 %v2443
    %v2576 = vunpack.c.l.b16 %v2444
    %v2577 = vunpack.c.l.b16 %v2445
    %v2578 = vunpack.c.l.b16 %v2446
    %v2579 = vunpack.c.l.b16 %v2447
    %v2580 = vunpack.c.l.b16 %v2448
    %v2581 = vunpack.c.l.b16 %v2449
    %v2582 = vunpack.c.l.b16 %v2450
    %v2583 = vunpack.c.l.b16 %v2451
    %v2584 = vunpack.c.l.b16 %v2452
    %v2585 = vunpack.c.l.b16 %v2453
    %v2586 = vunpack.c.l.b16 %v2454
    %v2587 = vunpack.c.l.b16 %v2455
    %v2588 = vunpack.c.l.b16 %v2456
    %v2589 = vunpack.c.l.b16 %v2457
    %v2590 = vunpack.c.l.b16 %v2458
    %v2591 = vunpack.c.l.b16 %v2459
    %v2592 = vunpack.c.l.b16 %v2460
    %v2593 = vunpack.c.l.b16 %v2461
    %v2594 = vunpack.c.l.b16 %v2462
    %v2595 = vunpack.c.l.b16 %v2463
    %v2596 = vunpack.c.l.b16 %v2464
    %v2597 = vunpack.c.l.b16 %v2465
    %v2598 = vunpack.c.l.b16 %v2466
    %v2599 = vunpack.c.l.b16 %v2467
    %v2600 = vunpack.c.l.b16 %v2468
    %v2601 = vpack.c.b16 %v2538, %v2537
    %v2602 = vpack.c.b16 %v2540, %v2539
    %v2603 = vpack.c.b16 %v2542, %v2541
    %v2604 = vpack.c.b16 %v2544, %v2543
    %v2605 = vpack.c.b16 %v2546, %v2545
    %v2606 = vpack.c.b16 %v2548, %v2547
    %v2607 = vpack.c.b16 %v2550, %v2549
    %v2608 = vpack.c.b16 %v2552, %v2551
    %v2609 = vpack.c.b16 %v2554, %v2553
    %v2610 = vpack.c.b16 %v2556, %v2555
    %v2611 = vpack.c.b16 %v2558, %v2557
    %v2612 = vpack.c.b16 %v2560, %v2559
    %v2613 = vpack.c.b16 %v2562, %v2561
    %v2614 = vpack.c.b16 %v2564, %v2563
    %v2615 = vpack.c.b16 %v2566, %v2565
    %v2616 = vpack.c.b16 %v2568, %v2567
    %v2617 = vpack.c.b16 %v2570, %v2569
    %v2618 = vpack.c.b16 %v2572, %v2571
    %v2619 = vpack.c.b16 %v2574, %v2573
    %v2620 = vpack.c.b16 %v2576, %v2575
    %v2621 = vpack.c.b16 %v2578, %v2577
    %v2622 = vpack.c.b16 %v2580, %v2579
    %v2623 = vpack.c.b16 %v2582, %v2581
    %v2624 = vpack.c.b16 %v2584, %v2583
    %v2625 = vpack.c.b16 %v2586, %v2585
    %v2626 = vpack.c.b16 %v2588, %v2587
    %v2627 = vpack.c.b16 %v2590, %v2589
    %v2628 = vpack.c.b16 %v2592, %v2591
    %v2629 = vpack.c.b16 %v2594, %v2593
    %v2630 = vpack.c.b16 %v2596, %v2595
    %v2631 = vpack.c.b16 %v2598, %v2597
    %v2632 = vpack.c.b16 %v2600, %v2599
    %2665 = vmatpush.bf16.msra.mxu0 %v2608
    %2666 = vmatpush.bf16.msra.mxu0 %v2607
    %2667 = vmatpush.bf16.msra.mxu0 %v2606
    %2668 = vmatpush.bf16.msra.mxu0 %v2605
    %2669 = vmatpush.bf16.msra.mxu0 %v2604
    %2670 = vmatpush.bf16.msra.mxu0 %v2603
    %2671 = vmatpush.bf16.msra.mxu0 %v2602
    %2672 = vmatpush.bf16.msra.mxu0 %v2601
    %2673 = vmatmul.bf16.gmra.mxu0 %v2401
    %v2674 = vpop.f32.mrf.mxu0
    %v2675 = vadd.f32 %v2471, %v2674
    %v2676 = vpop.f32.mrf.mxu0
    %v2677 = vadd.f32 %v2471, %v2676
    %2678 = vdwg.mxu0
    %2679 = vmatpush.bf16.msra.mxu0 %v2616
    %2680 = vmatpush.bf16.msra.mxu0 %v2615
    %2681 = vmatpush.bf16.msra.mxu0 %v2614
    %2682 = vmatpush.bf16.msra.mxu0 %v2613
    %2683 = vmatpush.bf16.msra.mxu0 %v2612
    %2684 = vmatpush.bf16.msra.mxu0 %v2611
    %2685 = vmatpush.bf16.msra.mxu0 %v2610
    %2686 = vmatpush.bf16.msra.mxu0 %v2609
    %2687 = vmatmul.bf16.gmra.mxu0 %v2402
    %v2688 = vpop.f32.mrf.mxu0
    %v2689 = vadd.f32 %v2675, %v2688
    %v2690 = vpop.f32.mrf.mxu0
    %v2691 = vadd.f32 %v2677, %v2690
    %2692 = vdwg.mxu0
    %2693 = vmatpush.bf16.msra.mxu0 %v2624
    %2694 = vmatpush.bf16.msra.mxu0 %v2623
    %2695 = vmatpush.bf16.msra.mxu0 %v2622
    %2696 = vmatpush.bf16.msra.mxu0 %v2621
    %2697 = vmatpush.bf16.msra.mxu0 %v2620
    %2698 = vmatpush.bf16.msra.mxu0 %v2619
    %2699 = vmatpush.bf16.msra.mxu0 %v2618
    %2700 = vmatpush.bf16.msra.mxu0 %v2617
    %2701 = vmatmul.bf16.gmra.mxu0 %v2403
    %v2702 = vpop.f32.mrf.mxu0
    %v2703 = vadd.f32 %v2689, %v2702
    %v2704 = vpop.f32.mrf.mxu0
    %v2705 = vadd.f32 %v2691, %v2704
    %2706 = vdwg.mxu0
    %2707 = vmatpush.bf16.msra.mxu0 %v2632
    %2708 = vmatpush.bf16.msra.mxu0 %v2631
    %2709 = vmatpush.bf16.msra.mxu0 %v2630
    %2710 = vmatpush.bf16.msra.mxu0 %v2629
    %2711 = vmatpush.bf16.msra.mxu0 %v2628
    %2712 = vmatpush.bf16.msra.mxu0 %v2627
    %2713 = vmatpush.bf16.msra.mxu0 %v2626
    %2714 = vmatpush.bf16.msra.mxu0 %v2625
    %2715 = vmatmul.bf16.gmra.mxu0 %v2404
    %v2716 = vpop.f32.mrf.mxu0
    %v2717 = vadd.f32 %v2703, %v2716
    %v2718 = vpop.f32.mrf.mxu0
    %v2719 = vadd.f32 %v2705, %v2718
    %2720 = vdwg.mxu0
    %2721 = vmax.xlane.f32.xlu0 %v2717
    %v2722 = vpop.xlane.xlu0 %2721
    %2723 = vmax.xlane.f32.xlu0 %v2719
    %v2724 = vpop.xlane.xlu0 %2723
    %v2725 = vsub.f32 %v2717, %v2722
    %v2726 = vsub.f32 %v2719, %v2724
    %v2727 = vmul.f32 %v2725, 1.442695
    %v2728 = vpow.pop %v2727
    %v2729 = vmul.f32 %v2726, 1.442695
    %v2730 = vpow.pop %v2729
    %2731 = vadd.xlane.f32.xlu0 %v2728
    %v2732 = vpop.xlane.xlu0 %2731
    %2733 = vadd.xlane.f32.xlu0 %v2730
    %v2734 = vpop.xlane.xlu0 %2733
    %v2735 = vrcp.pop %v2732
    %v2736 = vmul.f32 %v2732, %v2735
    %v2737 = vsub.f32 1.0, %v2736
    %v2738 = vmul.f32 %v2735, %v2737
    %v2739 = vadd.f32 %v2735, %v2738
    %vm2740 = vweird.f32 %v2732
    %vm2741 = vweird.f32 %v2735
    %vm2742 = vmor %vm2740, %vm2741
    %v2743 = vsel %vm2742, %v2735, %v2739
    %v2744 = vand.u32 2147483647, %v2732
    %vm2745 = vcmp.eq.f32.partialorder %v2744, 8.507059e+37
    %v2746 = vand.u32 %v2732, 2147483648
    %v2747 = vor.u32 1.1754944e-38, %v2746
    %v2748 = vsel %vm2745, %v2747, %v2743
    %v2749 = vrcp.pop %v2734
    %v2750 = vmul.f32 %v2734, %v2749
    %v2751 = vsub.f32 1.0, %v2750
    %v2752 = vmul.f32 %v2749, %v2751
    %v2753 = vadd.f32 %v2749, %v2752
    %vm2754 = vweird.f32 %v2734
    %vm2755 = vweird.f32 %v2749
    %vm2756 = vmor %vm2754, %vm2755
    %v2757 = vsel %vm2756, %v2749, %v2753
    %v2758 = vand.u32 2147483647, %v2734
    %vm2759 = vcmp.eq.f32.partialorder %v2758, 8.507059e+37
    %v2760 = vand.u32 %v2734, 2147483648
    %v2761 = vor.u32 1.1754944e-38, %v2760
    %v2762 = vsel %vm2759, %v2761, %v2757
    %v2763 = vmul.f32 %v2728, %v2748
    %v2764 = vmul.f32 %v2730, %v2762
    %v2765 = vpack.c.bf16 %v2763, %v2763
    %v2766 = vpack.c.bf16 %v2764, %v2764
    %2767 = vst [vmem:[%s8] sm:$0xf] %v2765
    %2768 = vst [vmem:[%s8 + $0x4] sm:$0xf] %v2766
    // Predicated region
    $region50: #{baseline_model1_forward.1} parent=1 // pred_check
      _
    $region51: #{baseline_model1_forward.1} parent=1 // pred_check_branch
      %2770 = sbr.rel (0) target = $region53
    $region52: #{baseline_model1_forward.1} parent=1 // pred_region
      _
    $region53: #{baseline_model1_forward.1} parent=1 // pred_fallthru
      _
    // Predicated region
    $region54: #{baseline_model1_forward.1} parent=1 // pred_check
      _
    $region55: #{baseline_model1_forward.1} parent=1 // pred_check_branch
      %2772 = sbr.rel (0) target = $region57
    $region56: #{baseline_model1_forward.1} parent=1 // pred_region
      _
    $region57: #{baseline_model1_forward.1} parent=1 // pred_fallthru
      _
    %2773 = vsyncpa [#allocation3], 1
    %2774 = vsyncpa [#allocation7], 1
    %2775 = vsyncpa [#allocation4], 1

</llo_original>
